<compile_context>
chip_gen: v5e
topology: v5e:2x2
jax: 0.10.0
libtpu: 0.0.40
codegen_flags: <defaults>
</compile_context>

<pallas_src>
import math

import jax
import jax.numpy as jnp
from jax.experimental import pallas as pl
from jax.experimental.pallas import tpu as pltpu

N_LAYERS = 8          # 4 disentangler + 4 entangler
GENDER_LAYER = 3      # gender vector added after disentangler layer index 3
LRELU_SLOPE = 0.2
LRELU_GAIN = math.sqrt(2.0)


# --------------------------------------------------------------------------- #
# Kernels
# --------------------------------------------------------------------------- #
def _swapper_kernel_resident(latent_ref, gender_ref, gvec_ref, w_ref, b_ref, out_ref):
    """All 8 layers' weights resident in VMEM; grid = (batch_tiles,)."""
    gmult = gender_ref[...] * jnp.float32(2.0) - jnp.float32(1.0)       # [bm,1] f32
    x = latent_ref[...].astype(w_ref.dtype)                             # bf16 [bm,Z]
    n_layers = w_ref.shape[0]
    for i in range(n_layers):
        # bf16 x bf16 MXU matmul, f32 accumulate. Weight gain is pre-folded.
        y = jnp.dot(x, w_ref[i], preferred_element_type=jnp.float32) + b_ref[i]
        act = jnp.maximum(y, jnp.float32(LRELU_SLOPE) * y) * jnp.float32(LRELU_GAIN)
        if i == GENDER_LAYER:
            act = act + gmult * gvec_ref[...]                            # [1,Z] bcast
        if i + 1 < n_layers:
            x = act.astype(w_ref.dtype)        # bf16 carry into next MXU dot
        else:
            out_ref[...] = act                 # final output stays f32


def _swapper_kernel_blocked(latent_ref, gender_ref, gvec_ref, w_ref, b_ref,
                            out_ref, x_sc):
    """grid = (N_LAYERS, batch_tiles): layer OUTER / batch INNER, so each layer's
    ZxZ weight block is fetched from HBM once and reused across all batch tiles.
    Activations for every batch tile are carried in a bf16 VMEM scratch."""
    l = pl.program_id(0)
    bt = pl.program_id(1)

    @pl.when(l == 0)
    def _():
        x_sc[bt] = latent_ref[...].astype(x_sc.dtype)

    y = jnp.dot(x_sc[bt], w_ref[0], preferred_element_type=jnp.float32) + b_ref[0]
    act = jnp.maximum(y, jnp.float32(LRELU_SLOPE) * y) * jnp.float32(LRELU_GAIN)

    # Gender add after disentangler layer 3. A scalar-select keeps the math
    # identical to the resident path; the extra bm x Z FMA is negligible in
    # this weight-DMA-bound regime.
    gscale = jnp.where(l == GENDER_LAYER, jnp.float32(1.0), jnp.float32(0.0))
    gmult = (gender_ref[...] * jnp.float32(2.0) - jnp.float32(1.0)) * gscale
    act = act + gmult * gvec_ref[...]

    x_sc[bt] = act.astype(x_sc.dtype)

    @pl.when(l == pl.num_programs(0) - 1)
    def _():
        out_ref[...] = act                     # final output stays f32


# --------------------------------------------------------------------------- #
# Parameter prep (one-time) + wrapper
# --------------------------------------------------------------------------- #
def prepare_params(w_oi, biases, gvec, weight_dtype=jnp.bfloat16):
    """One-time prep: transpose torch [out,in] -> [in,out], pre-fold the
    FullyConnectedLayer weight gain 1/sqrt(in_features), cast matmul weights to
    bf16. Biases / gvec stay f32 (all VPU math stays f32)."""
    L, z_out, z_in = w_oi.shape
    wg = 1.0 / math.sqrt(z_in)
    w_t = (jnp.transpose(w_oi, (0, 2, 1)) * jnp.float32(wg)).astype(weight_dtype)
    b = biases.astype(jnp.float32).reshape(L, 1, z_out)
    g = gvec.astype(jnp.float32).reshape(1, gvec.shape[0])
    return w_t, b, g


def _vmem_budget_bytes():
    """Per-kernel VMEM budget derived from the chip's physical VMEM
    (v7x: 64 MiB, v5e/v6e: 128 MiB). Conservative 48 MiB fallback."""
    try:
        cap = int(getattr(pltpu.get_tpu_info(), "vmem_capacity_bytes", 0))
        if cap > 0:
            return min(int(cap * 3 // 4), 100 << 20)
    except Exception:
        pass
    return 48 << 20


def _pick_bm(B):
    """Batch (M) tile: 256 fills the 256-row MXU on v6e/v7x for big batches;
    128 otherwise (also fine on v5e's 4x128^2 MXU); B itself for small B."""
    if B % 256 == 0 and B >= 512:
        return 256
    if B % 128 == 0 and B >= 256:
        return 128
    return B


def latent_swapper_v0(latent, src_gender, w_t, biases, gvec, magnitude=1.0,
                      vmem_budget_bytes=None):
    """latent: [B,Z] f32, src_gender: [B,1] f32, w_t: [8,Z,Z] (in,out) bf16 with
    the 1/sqrt(Z) gain pre-folded, biases: [8,1,Z] f32, gvec: [1,Z] f32.
    Returns [B,Z] f32. `vmem_budget_bytes` overrides the path-selection budget
    (mainly for tests)."""
    del magnitude  # accepted but unused by the reference forward pass
    B, Z = latent.shape
    L = w_t.shape[0]
    assert L == N_LAYERS

    latent = latent.astype(jnp.float32)
    src_gender = src_gender.astype(jnp.float32).reshape(B, 1)

    bm = _pick_bm(B)
    n_bt = B // bm

    hw_budget = _vmem_budget_bytes()
    budget = hw_budget if vmem_budget_bytes is None else int(vmem_budget_bytes)

    # Resident iff the whole (single-buffered) weight stack plus activation /
    # in / out tiles fits the VMEM budget.
    weight_bytes = L * Z * Z * w_t.dtype.itemsize
    reserve_bytes = 4 * bm * Z * 4 + (2 << 20)
    use_resident = (weight_bytes + reserve_bytes) <= budget

    if use_resident:
        def call(single_buffer_weights):
            wb_kwargs = (dict(pipeline_mode=pl.Buffered(1))
                         if single_buffer_weights else {})
            return pl.pallas_call(
                _swapper_kernel_resident,
                out_shape=jax.ShapeDtypeStruct((B, Z), jnp.float32),
                grid_spec=pltpu.PrefetchScalarGridSpec(
                    num_scalar_prefetch=0,
                    grid=(n_bt,),
                    in_specs=[
                        pl.BlockSpec((bm, Z), lambda b: (b, 0)),             # latent
                        pl.BlockSpec((bm, 1), lambda b: (b, 0)),             # src_gender
                        pl.BlockSpec((1, Z), lambda b: (0, 0)),              # gvec
                        pl.BlockSpec((L, Z, Z), lambda b: (0, 0, 0),         # weights
                                     **wb_kwargs),
                        pl.BlockSpec((L, 1, Z), lambda b: (0, 0, 0),         # biases
                                     **wb_kwargs),
                    ],
                    out_specs=pl.BlockSpec((bm, Z), lambda b: (b, 0)),
                ),
                compiler_params=pltpu.CompilerParams(
                    dimension_semantics=("parallel",),
                    vmem_limit_bytes=hw_budget),
            )(latent, src_gender, gvec, w_t, biases)

        try:
            # Grid-invariant weight/bias blocks: single buffer (halves weight VMEM).
            return call(True)
        except Exception:
            # pl.Buffered(1) rejected by this jax version -> default buffering.
            return call(False)

    # Blocked path (weights don't fit VMEM): layer-outer / batch-inner grid so
    # each Z x Z weight block is read from HBM exactly once.
    return pl.pallas_call(
        _swapper_kernel_blocked,
        out_shape=jax.ShapeDtypeStruct((B, Z), jnp.float32),
        grid_spec=pltpu.PrefetchScalarGridSpec(
            num_scalar_prefetch=0,
            grid=(N_LAYERS, n_bt),
            in_specs=[
                # latent is only consumed at l == 0; collapse to block 0 after
                # layer 0 so it is not re-read from HBM on every layer.
                pl.BlockSpec((bm, Z), lambda l, bt: (jnp.where(l == 0, bt, 0), 0)),
                pl.BlockSpec((bm, 1), lambda l, bt: (bt, 0)),       # src_gender
                pl.BlockSpec((1, Z), lambda l, bt: (0, 0)),         # gvec
                pl.BlockSpec((1, Z, Z), lambda l, bt: (l, 0, 0)),   # weights (per layer)
                pl.BlockSpec((1, 1, Z), lambda l, bt: (l, 0, 0)),   # biases  (per layer)
            ],
            out_specs=pl.BlockSpec((bm, Z), lambda l, bt: (bt, 0)),
            scratch_shapes=[pltpu.VMEM((n_bt, bm, Z), jnp.bfloat16)],
        ),
        compiler_params=pltpu.CompilerParams(
            # Weight-DMA-bound regime: sharding the batch axis across cores
            # would duplicate the weight DMA per core, so keep it sequential.
            dimension_semantics=("arbitrary", "arbitrary"),
            vmem_limit_bytes=hw_budget),
    )(latent, src_gender, gvec, w_t, biases)


# --------------------------------------------------------------------------- #
# References
# --------------------------------------------------------------------------- #
def _reference_f32(latent, src_gender, w_oi, biases, gvec):
    """Exact PyTorch-module math in f32 (per-layer weight gain, f32 throughout)."""
    wg = 1.0 / math.sqrt(w_oi.shape[2])
    x = latent.astype(jnp.float32)
    for i in range(w_oi.shape[0]):
        y = x @ (w_oi[i].T * wg) + biases[i]
        x = jnp.where(y >= 0.0, y, LRELU_SLOPE * y) * LRELU_GAIN
        if i == GENDER_LAYER:
            x = x + (src_gender * 2.0 - 1.0) * gvec[None, :]
    return x


def _reference_mirrored(latent, src_gender, w_t, biases, gvec):
    """Mirrors the kernel's dtype path: bf16 MXU operands, f32 accumulate /
    bias / lrelu / gender-add, bf16 inter-layer activation carry, f32 output."""
    L = w_t.shape[0]
    x = latent.astype(w_t.dtype)
    out = None
    for i in range(L):
        y = jnp.dot(x, w_t[i], preferred_element_type=jnp.float32) + biases[i]
        act = jnp.maximum(y, jnp.float32(LRELU_SLOPE) * y) * jnp.float32(LRELU_GAIN)
        if i == GENDER_LAYER:
            act = act + (src_gender * 2.0 - 1.0) * gvec
        if i + 1 < L:
            x = act.astype(w_t.dtype)
        else:
            out = act
    return out


# --------------------------------------------------------------------------- #
if __name__ == "__main__":
    # (B, Z, forced VMEM budget): None -> resident path; a small forced budget
    # exercises the blocked (layer-outer / batch-inner) path.
    configs = [
        (8, 128, None),          # resident, single batch tile
        (16, 256, None),         # resident
        (16, 256, 1 << 20),      # blocked, n_bt = 1
        (256, 128, None),        # resident, n_bt = 2 (parallel batch axis)
        (256, 128, 256 << 10),   # blocked, n_bt = 2 (weight block reused per tile)
    ]
    for (B, Z, budget) in configs:
        key = jax.random.PRNGKey(0)
        k_lat, k_w, k_gvec, k_gender = jax.random.split(key, 4)

        latent = jax.random.normal(k_lat, (B, Z), dtype=jnp.float32)
        # torch.randn([out_features, in_features]) per layer
        w_oi = jax.random.normal(k_w, (N_LAYERS, Z, Z), dtype=jnp.float32)
        biases = jnp.zeros((N_LAYERS, Z), dtype=jnp.float32)          # bias_init=0
        gvec = jax.random.normal(k_gvec, (Z,), dtype=jnp.float32)     # nn.Parameter(randn)
        src_gender = jax.random.bernoulli(k_gender, 0.5, (B, 1)).astype(jnp.float32)

        w_t, b_p, g_p = prepare_params(w_oi, biases, gvec)            # one-time prep

        out = latent_swapper_v0(latent, src_gender, w_t, b_p, g_p, magnitude=1.0,
                                vmem_budget_bytes=budget)
        out = jax.block_until_ready(out)
        assert out.shape == (B, Z) and out.dtype == jnp.float32

        # Tight check vs a reference that mirrors the kernel's dtype path.
        ref_m = _reference_mirrored(latent, src_gender, w_t, b_p, g_p)
        assert jnp.allclose(out, ref_m, rtol=2e-3, atol=2e-3), \
            f"mismatch vs bf16-mirrored reference at B={B}, Z={Z}, budget={budget}"

        # Loose sanity check vs exact-f32 PyTorch math (bf16 weights drift a bit
        # over 8 chained layers; outputs have ~unit std).
        ref_f = _reference_f32(latent, src_gender, w_oi, biases, gvec)
        max_err = float(jnp.max(jnp.abs(out - ref_f)))
        assert max_err < 0.3, \
            f"bf16 drift too large vs f32 reference at B={B}, Z={Z}: {max_err}"

    print("KERNEL_OK")
</pallas_src>

<mosaic_0001>
module attributes {stable_mosaic.version = 11 : i64} {
  func.func @_swapper_kernel_resident(%arg0: i32, %arg1: memref<8x128xf32, #tpu.memory_space<vmem>>, %arg2: memref<8x1xf32, #tpu.memory_space<vmem>>, %arg3: memref<1x128xf32, #tpu.memory_space<vmem>>, %arg4: memref<8x128x128xbf16, #tpu.memory_space<vmem>>, %arg5: memref<8x1x128xf32, #tpu.memory_space<vmem>>, %arg6: memref<8x128xf32, #tpu.memory_space<vmem>>) attributes {dimension_semantics = [#tpu.dimension_semantics<parallel>], iteration_bounds = array<i64: 1>, scalar_prefetch = 0 : i64, scratch_operands = 0 : i64, tpu.core_type = #tpu.core_type<tc>, window_params = [{transform_indices = @transform_0, window_bounds = array<i64: 8, 128>}, {transform_indices = @transform_1, window_bounds = array<i64: 8, 1>}, {pipeline_mode = #tpu.pipeline_mode<synchronous>, transform_indices = @transform_2, window_bounds = array<i64: 1, 128>}, {pipeline_mode = #tpu.pipeline_mode<synchronous>, transform_indices = @transform_3, window_bounds = array<i64: 8, 128, 128>}, {pipeline_mode = #tpu.pipeline_mode<synchronous>, transform_indices = @transform_4, window_bounds = array<i64: 8, 1, 128>}, {transform_indices = @transform_5, window_bounds = array<i64: 8, 128>}]} {
    %c0 = arith.constant 0 : index
    %c0_0 = arith.constant 0 : index
    %0 = vector.load %arg2[%c0, %c0_0] : memref<8x1xf32, #tpu.memory_space<vmem>>, vector<8x1xf32>
    %cst = arith.constant 2.000000e+00 : f32
    %1 = vector.broadcast %cst : f32 to vector<8x1xf32>
    %2 = arith.mulf %0, %1 : vector<8x1xf32>
    %cst_1 = arith.constant 1.000000e+00 : f32
    %3 = vector.broadcast %cst_1 : f32 to vector<8x1xf32>
    %4 = arith.subf %2, %3 : vector<8x1xf32>
    %c0_2 = arith.constant 0 : index
    %c0_3 = arith.constant 0 : index
    %5 = vector.load %arg1[%c0_2, %c0_3] : memref<8x128xf32, #tpu.memory_space<vmem>>, vector<8x128xf32>
    %6 = arith.truncf %5 : vector<8x128xf32> to vector<8x128xbf16>
    %c0_4 = arith.constant 0 : index
    %c0_5 = arith.constant 0 : index
    %c0_6 = arith.constant 0 : index
    %7 = vector.load %arg4[%c0_4, %c0_5, %c0_6] : memref<8x128x128xbf16, #tpu.memory_space<vmem>>, vector<1x128x128xbf16>
    %8 = vector.shape_cast %7 : vector<1x128x128xbf16> to vector<128x128xbf16>
    %cst_7 = arith.constant dense<0.000000e+00> : vector<8x128xf32>
    %9 = tpu.matmul %6, %8, %cst_7 {dimension_numbers = #tpu.dot_dimension_numbers<[1], [0], [0], [1], [0, 0, 1, 1], [], []>} : vector<8x128xbf16>, vector<128x128xbf16>, vector<8x128xf32> -> vector<8x128xf32>
    %c0_8 = arith.constant 0 : index
    %c0_9 = arith.constant 0 : index
    %c0_10 = arith.constant 0 : index
    %10 = vector.load %arg5[%c0_8, %c0_9, %c0_10] : memref<8x1x128xf32, #tpu.memory_space<vmem>>, vector<1x1x128xf32>
    %11 = vector.shape_cast %10 : vector<1x1x128xf32> to vector<1x128xf32>
    %12 = vector.broadcast %11 : vector<1x128xf32> to vector<8x128xf32>
    %13 = arith.addf %9, %12 : vector<8x128xf32>
    %cst_11 = arith.constant 2.000000e-01 : f32
    %14 = vector.broadcast %cst_11 : f32 to vector<8x128xf32>
    %15 = arith.mulf %14, %13 : vector<8x128xf32>
    %16 = arith.maximumf %13, %15 : vector<8x128xf32>
    %cst_12 = arith.constant 1.41421354 : f32
    %17 = vector.broadcast %cst_12 : f32 to vector<8x128xf32>
    %18 = arith.mulf %16, %17 : vector<8x128xf32>
    %19 = arith.truncf %18 : vector<8x128xf32> to vector<8x128xbf16>
    %c1 = arith.constant 1 : index
    %c0_13 = arith.constant 0 : index
    %c0_14 = arith.constant 0 : index
    %20 = vector.load %arg4[%c1, %c0_13, %c0_14] : memref<8x128x128xbf16, #tpu.memory_space<vmem>>, vector<1x128x128xbf16>
    %21 = vector.shape_cast %20 : vector<1x128x128xbf16> to vector<128x128xbf16>
    %cst_15 = arith.constant dense<0.000000e+00> : vector<8x128xf32>
    %22 = tpu.matmul %19, %21, %cst_15 {dimension_numbers = #tpu.dot_dimension_numbers<[1], [0], [0], [1], [0, 0, 1, 1], [], []>} : vector<8x128xbf16>, vector<128x128xbf16>, vector<8x128xf32> -> vector<8x128xf32>
    %c1_16 = arith.constant 1 : index
    %c0_17 = arith.constant 0 : index
    %c0_18 = arith.constant 0 : index
    %23 = vector.load %arg5[%c1_16, %c0_17, %c0_18] : memref<8x1x128xf32, #tpu.memory_space<vmem>>, vector<1x1x128xf32>
    %24 = vector.shape_cast %23 : vector<1x1x128xf32> to vector<1x128xf32>
    %25 = vector.broadcast %24 : vector<1x128xf32> to vector<8x128xf32>
    %26 = arith.addf %22, %25 : vector<8x128xf32>
    %cst_19 = arith.constant 2.000000e-01 : f32
    %27 = vector.broadcast %cst_19 : f32 to vector<8x128xf32>
    %28 = arith.mulf %27, %26 : vector<8x128xf32>
    %29 = arith.maximumf %26, %28 : vector<8x128xf32>
    %cst_20 = arith.constant 1.41421354 : f32
    %30 = vector.broadcast %cst_20 : f32 to vector<8x128xf32>
    %31 = arith.mulf %29, %30 : vector<8x128xf32>
    %32 = arith.truncf %31 : vector<8x128xf32> to vector<8x128xbf16>
    %c2 = arith.constant 2 : index
    %c0_21 = arith.constant 0 : index
    %c0_22 = arith.constant 0 : index
    %33 = vector.load %arg4[%c2, %c0_21, %c0_22] : memref<8x128x128xbf16, #tpu.memory_space<vmem>>, vector<1x128x128xbf16>
    %34 = vector.shape_cast %33 : vector<1x128x128xbf16> to vector<128x128xbf16>
    %cst_23 = arith.constant dense<0.000000e+00> : vector<8x128xf32>
    %35 = tpu.matmul %32, %34, %cst_23 {dimension_numbers = #tpu.dot_dimension_numbers<[1], [0], [0], [1], [0, 0, 1, 1], [], []>} : vector<8x128xbf16>, vector<128x128xbf16>, vector<8x128xf32> -> vector<8x128xf32>
    %c2_24 = arith.constant 2 : index
    %c0_25 = arith.constant 0 : index
    %c0_26 = arith.constant 0 : index
    %36 = vector.load %arg5[%c2_24, %c0_25, %c0_26] : memref<8x1x128xf32, #tpu.memory_space<vmem>>, vector<1x1x128xf32>
    %37 = vector.shape_cast %36 : vector<1x1x128xf32> to vector<1x128xf32>
    %38 = vector.broadcast %37 : vector<1x128xf32> to vector<8x128xf32>
    %39 = arith.addf %35, %38 : vector<8x128xf32>
    %cst_27 = arith.constant 2.000000e-01 : f32
    %40 = vector.broadcast %cst_27 : f32 to vector<8x128xf32>
    %41 = arith.mulf %40, %39 : vector<8x128xf32>
    %42 = arith.maximumf %39, %41 : vector<8x128xf32>
    %cst_28 = arith.constant 1.41421354 : f32
    %43 = vector.broadcast %cst_28 : f32 to vector<8x128xf32>
    %44 = arith.mulf %42, %43 : vector<8x128xf32>
    %45 = arith.truncf %44 : vector<8x128xf32> to vector<8x128xbf16>
    %c3 = arith.constant 3 : index
    %c0_29 = arith.constant 0 : index
    %c0_30 = arith.constant 0 : index
    %46 = vector.load %arg4[%c3, %c0_29, %c0_30] : memref<8x128x128xbf16, #tpu.memory_space<vmem>>, vector<1x128x128xbf16>
    %47 = vector.shape_cast %46 : vector<1x128x128xbf16> to vector<128x128xbf16>
    %cst_31 = arith.constant dense<0.000000e+00> : vector<8x128xf32>
    %48 = tpu.matmul %45, %47, %cst_31 {dimension_numbers = #tpu.dot_dimension_numbers<[1], [0], [0], [1], [0, 0, 1, 1], [], []>} : vector<8x128xbf16>, vector<128x128xbf16>, vector<8x128xf32> -> vector<8x128xf32>
    %c3_32 = arith.constant 3 : index
    %c0_33 = arith.constant 0 : index
    %c0_34 = arith.constant 0 : index
    %49 = vector.load %arg5[%c3_32, %c0_33, %c0_34] : memref<8x1x128xf32, #tpu.memory_space<vmem>>, vector<1x1x128xf32>
    %50 = vector.shape_cast %49 : vector<1x1x128xf32> to vector<1x128xf32>
    %51 = vector.broadcast %50 : vector<1x128xf32> to vector<8x128xf32>
    %52 = arith.addf %48, %51 : vector<8x128xf32>
    %cst_35 = arith.constant 2.000000e-01 : f32
    %53 = vector.broadcast %cst_35 : f32 to vector<8x128xf32>
    %54 = arith.mulf %53, %52 : vector<8x128xf32>
    %55 = arith.maximumf %52, %54 : vector<8x128xf32>
    %cst_36 = arith.constant 1.41421354 : f32
    %56 = vector.broadcast %cst_36 : f32 to vector<8x128xf32>
    %57 = arith.mulf %55, %56 : vector<8x128xf32>
    %c0_37 = arith.constant 0 : index
    %c0_38 = arith.constant 0 : index
    %58 = vector.load %arg3[%c0_37, %c0_38] : memref<1x128xf32, #tpu.memory_space<vmem>>, vector<1x128xf32>
    %59 = vector.broadcast %4 : vector<8x1xf32> to vector<8x128xf32>
    %60 = vector.broadcast %58 : vector<1x128xf32> to vector<8x128xf32>
    %61 = arith.mulf %59, %60 : vector<8x128xf32>
    %62 = arith.addf %57, %61 : vector<8x128xf32>
    %63 = arith.truncf %62 : vector<8x128xf32> to vector<8x128xbf16>
    %c4 = arith.constant 4 : index
    %c0_39 = arith.constant 0 : index
    %c0_40 = arith.constant 0 : index
    %64 = vector.load %arg4[%c4, %c0_39, %c0_40] : memref<8x128x128xbf16, #tpu.memory_space<vmem>>, vector<1x128x128xbf16>
    %65 = vector.shape_cast %64 : vector<1x128x128xbf16> to vector<128x128xbf16>
    %cst_41 = arith.constant dense<0.000000e+00> : vector<8x128xf32>
    %66 = tpu.matmul %63, %65, %cst_41 {dimension_numbers = #tpu.dot_dimension_numbers<[1], [0], [0], [1], [0, 0, 1, 1], [], []>} : vector<8x128xbf16>, vector<128x128xbf16>, vector<8x128xf32> -> vector<8x128xf32>
    %c4_42 = arith.constant 4 : index
    %c0_43 = arith.constant 0 : index
    %c0_44 = arith.constant 0 : index
    %67 = vector.load %arg5[%c4_42, %c0_43, %c0_44] : memref<8x1x128xf32, #tpu.memory_space<vmem>>, vector<1x1x128xf32>
    %68 = vector.shape_cast %67 : vector<1x1x128xf32> to vector<1x128xf32>
    %69 = vector.broadcast %68 : vector<1x128xf32> to vector<8x128xf32>
    %70 = arith.addf %66, %69 : vector<8x128xf32>
    %cst_45 = arith.constant 2.000000e-01 : f32
    %71 = vector.broadcast %cst_45 : f32 to vector<8x128xf32>
    %72 = arith.mulf %71, %70 : vector<8x128xf32>
    %73 = arith.maximumf %70, %72 : vector<8x128xf32>
    %cst_46 = arith.constant 1.41421354 : f32
    %74 = vector.broadcast %cst_46 : f32 to vector<8x128xf32>
    %75 = arith.mulf %73, %74 : vector<8x128xf32>
    %76 = arith.truncf %75 : vector<8x128xf32> to vector<8x128xbf16>
    %c5 = arith.constant 5 : index
    %c0_47 = arith.constant 0 : index
    %c0_48 = arith.constant 0 : index
    %77 = vector.load %arg4[%c5, %c0_47, %c0_48] : memref<8x128x128xbf16, #tpu.memory_space<vmem>>, vector<1x128x128xbf16>
    %78 = vector.shape_cast %77 : vector<1x128x128xbf16> to vector<128x128xbf16>
    %cst_49 = arith.constant dense<0.000000e+00> : vector<8x128xf32>
    %79 = tpu.matmul %76, %78, %cst_49 {dimension_numbers = #tpu.dot_dimension_numbers<[1], [0], [0], [1], [0, 0, 1, 1], [], []>} : vector<8x128xbf16>, vector<128x128xbf16>, vector<8x128xf32> -> vector<8x128xf32>
    %c5_50 = arith.constant 5 : index
    %c0_51 = arith.constant 0 : index
    %c0_52 = arith.constant 0 : index
    %80 = vector.load %arg5[%c5_50, %c0_51, %c0_52] : memref<8x1x128xf32, #tpu.memory_space<vmem>>, vector<1x1x128xf32>
    %81 = vector.shape_cast %80 : vector<1x1x128xf32> to vector<1x128xf32>
    %82 = vector.broadcast %81 : vector<1x128xf32> to vector<8x128xf32>
    %83 = arith.addf %79, %82 : vector<8x128xf32>
    %cst_53 = arith.constant 2.000000e-01 : f32
    %84 = vector.broadcast %cst_53 : f32 to vector<8x128xf32>
    %85 = arith.mulf %84, %83 : vector<8x128xf32>
    %86 = arith.maximumf %83, %85 : vector<8x128xf32>
    %cst_54 = arith.constant 1.41421354 : f32
    %87 = vector.broadcast %cst_54 : f32 to vector<8x128xf32>
    %88 = arith.mulf %86, %87 : vector<8x128xf32>
    %89 = arith.truncf %88 : vector<8x128xf32> to vector<8x128xbf16>
    %c6 = arith.constant 6 : index
    %c0_55 = arith.constant 0 : index
    %c0_56 = arith.constant 0 : index
    %90 = vector.load %arg4[%c6, %c0_55, %c0_56] : memref<8x128x128xbf16, #tpu.memory_space<vmem>>, vector<1x128x128xbf16>
    %91 = vector.shape_cast %90 : vector<1x128x128xbf16> to vector<128x128xbf16>
    %cst_57 = arith.constant dense<0.000000e+00> : vector<8x128xf32>
    %92 = tpu.matmul %89, %91, %cst_57 {dimension_numbers = #tpu.dot_dimension_numbers<[1], [0], [0], [1], [0, 0, 1, 1], [], []>} : vector<8x128xbf16>, vector<128x128xbf16>, vector<8x128xf32> -> vector<8x128xf32>
    %c6_58 = arith.constant 6 : index
    %c0_59 = arith.constant 0 : index
    %c0_60 = arith.constant 0 : index
    %93 = vector.load %arg5[%c6_58, %c0_59, %c0_60] : memref<8x1x128xf32, #tpu.memory_space<vmem>>, vector<1x1x128xf32>
    %94 = vector.shape_cast %93 : vector<1x1x128xf32> to vector<1x128xf32>
    %95 = vector.broadcast %94 : vector<1x128xf32> to vector<8x128xf32>
    %96 = arith.addf %92, %95 : vector<8x128xf32>
    %cst_61 = arith.constant 2.000000e-01 : f32
    %97 = vector.broadcast %cst_61 : f32 to vector<8x128xf32>
    %98 = arith.mulf %97, %96 : vector<8x128xf32>
    %99 = arith.maximumf %96, %98 : vector<8x128xf32>
    %cst_62 = arith.constant 1.41421354 : f32
    %100 = vector.broadcast %cst_62 : f32 to vector<8x128xf32>
    %101 = arith.mulf %99, %100 : vector<8x128xf32>
    %102 = arith.truncf %101 : vector<8x128xf32> to vector<8x128xbf16>
    %c7 = arith.constant 7 : index
    %c0_63 = arith.constant 0 : index
    %c0_64 = arith.constant 0 : index
    %103 = vector.load %arg4[%c7, %c0_63, %c0_64] : memref<8x128x128xbf16, #tpu.memory_space<vmem>>, vector<1x128x128xbf16>
    %104 = vector.shape_cast %103 : vector<1x128x128xbf16> to vector<128x128xbf16>
    %cst_65 = arith.constant dense<0.000000e+00> : vector<8x128xf32>
    %105 = tpu.matmul %102, %104, %cst_65 {dimension_numbers = #tpu.dot_dimension_numbers<[1], [0], [0], [1], [0, 0, 1, 1], [], []>} : vector<8x128xbf16>, vector<128x128xbf16>, vector<8x128xf32> -> vector<8x128xf32>
    %c7_66 = arith.constant 7 : index
    %c0_67 = arith.constant 0 : index
    %c0_68 = arith.constant 0 : index
    %106 = vector.load %arg5[%c7_66, %c0_67, %c0_68] : memref<8x1x128xf32, #tpu.memory_space<vmem>>, vector<1x1x128xf32>
    %107 = vector.shape_cast %106 : vector<1x1x128xf32> to vector<1x128xf32>
    %108 = vector.broadcast %107 : vector<1x128xf32> to vector<8x128xf32>
    %109 = arith.addf %105, %108 : vector<8x128xf32>
    %cst_69 = arith.constant 2.000000e-01 : f32
    %110 = vector.broadcast %cst_69 : f32 to vector<8x128xf32>
    %111 = arith.mulf %110, %109 : vector<8x128xf32>
    %112 = arith.maximumf %109, %111 : vector<8x128xf32>
    %cst_70 = arith.constant 1.41421354 : f32
    %113 = vector.broadcast %cst_70 : f32 to vector<8x128xf32>
    %114 = arith.mulf %112, %113 : vector<8x128xf32>
    %c0_71 = arith.constant 0 : index
    %c0_72 = arith.constant 0 : index
    %115 = vector.load %arg6[%c0_71, %c0_72] : memref<8x128xf32, #tpu.memory_space<vmem>>, vector<8x128xf32>
    tpu.vector_store %arg6[%c0_71, %c0_72], %114 {strides = array<i32>} : memref<8x128xf32, #tpu.memory_space<vmem>>, vector<8x128xf32>,
    return
  }
  func.func @transform_0(%arg0: i32) -> (i32, i32) {
    %c0_i32 = arith.constant 0 : i32
    %c0_i32_0 = arith.constant 0 : i32
    return %arg0, %c0_i32 : i32, i32
  }
  func.func @transform_1(%arg0: i32) -> (i32, i32) {
    %c0_i32 = arith.constant 0 : i32
    %c0_i32_0 = arith.constant 0 : i32
    return %arg0, %c0_i32 : i32, i32
  }
  func.func @transform_2(%arg0: i32) -> (i32, i32) {
    %c0_i32 = arith.constant 0 : i32
    %c0_i32_0 = arith.constant 0 : i32
    %c0_i32_1 = arith.constant 0 : i32
    return %c0_i32, %c0_i32_0 : i32, i32
  }
  func.func @transform_3(%arg0: i32) -> (i32, i32, i32) {
    %c0_i32 = arith.constant 0 : i32
    %c0_i32_0 = arith.constant 0 : i32
    %c0_i32_1 = arith.constant 0 : i32
    %c0_i32_2 = arith.constant 0 : i32
    return %c0_i32, %c0_i32_0, %c0_i32_1 : i32, i32, i32
  }
  func.func @transform_4(%arg0: i32) -> (i32, i32, i32) {
    %c0_i32 = arith.constant 0 : i32
    %c0_i32_0 = arith.constant 0 : i32
    %c0_i32_1 = arith.constant 0 : i32
    %c0_i32_2 = arith.constant 0 : i32
    return %c0_i32, %c0_i32_0, %c0_i32_1 : i32, i32, i32
  }
  func.func @transform_5(%arg0: i32) -> (i32, i32) {
    %c0_i32 = arith.constant 0 : i32
    %c0_i32_0 = arith.constant 0 : i32
    return %arg0, %c0_i32 : i32, i32
  }
}

module attributes {stable_mosaic.version = 11 : i64} {
  func.func @_swapper_kernel_resident(%arg0: i32, %arg1: memref<8x128xf32, #tpu.memory_space<vmem>>, %arg2: memref<8x1xf32, #tpu.memory_space<vmem>>, %arg3: memref<1x128xf32, #tpu.memory_space<vmem>>, %arg4: memref<8x128x128xbf16, #tpu.memory_space<vmem>>, %arg5: memref<8x1x128xf32, #tpu.memory_space<vmem>>, %arg6: memref<8x128xf32, #tpu.memory_space<vmem>>) attributes {dimension_semantics = [#tpu.dimension_semantics<parallel>], iteration_bounds = array<i64: 1>, scalar_prefetch = 0 : i64, scratch_operands = 0 : i64, tpu.core_type = #tpu.core_type<tc>, window_params = [{transform_indices = @transform_0, window_bounds = array<i64: 8, 128>}, {transform_indices = @transform_1, window_bounds = array<i64: 8, 1>}, {pipeline_mode = #tpu.pipeline_mode<synchronous>, transform_indices = @transform_2, window_bounds = array<i64: 1, 128>}, {pipeline_mode = #tpu.pipeline_mode<synchronous>, transform_indices = @transform_3, window_bounds = array<i64: 8, 128, 128>}, {pipeline_mode = #tpu.pipeline_mode<synchronous>, transform_indices = @transform_4, window_bounds = array<i64: 8, 1, 128>}, {transform_indices = @transform_5, window_bounds = array<i64: 8, 128>}]} {
    %c0 = arith.constant 0 : index
    %c0_0 = arith.constant 0 : index
    %0 = vector.load %arg2[%c0, %c0_0] : memref<8x1xf32, #tpu.memory_space<vmem>>, vector<8x1xf32>
    %cst = arith.constant 2.000000e+00 : f32
    %1 = vector.broadcast %cst : f32 to vector<8x1xf32>
    %2 = arith.mulf %0, %1 : vector<8x1xf32>
    %cst_1 = arith.constant 1.000000e+00 : f32
    %3 = vector.broadcast %cst_1 : f32 to vector<8x1xf32>
    %4 = arith.subf %2, %3 : vector<8x1xf32>
    %c0_2 = arith.constant 0 : index
    %c0_3 = arith.constant 0 : index
    %5 = vector.load %arg1[%c0_2, %c0_3] : memref<8x128xf32, #tpu.memory_space<vmem>>, vector<8x128xf32>
    %6 = arith.truncf %5 : vector<8x128xf32> to vector<8x128xbf16>
    %c0_4 = arith.constant 0 : index
    %c0_5 = arith.constant 0 : index
    %c0_6 = arith.constant 0 : index
    %7 = vector.load %arg4[%c0_4, %c0_5, %c0_6] : memref<8x128x128xbf16, #tpu.memory_space<vmem>>, vector<1x128x128xbf16>
    %8 = vector.shape_cast %7 : vector<1x128x128xbf16> to vector<128x128xbf16>
    %cst_7 = arith.constant dense<0.000000e+00> : vector<8x128xf32>
    %9 = tpu.matmul %6, %8, %cst_7 {dimension_numbers = #tpu.dot_dimension_numbers<[1], [0], [0], [1], [0, 0, 1, 1], [], []>} : vector<8x128xbf16>, vector<128x128xbf16>, vector<8x128xf32> -> vector<8x128xf32>
    %c0_8 = arith.constant 0 : index
    %c0_9 = arith.constant 0 : index
    %c0_10 = arith.constant 0 : index
    %10 = vector.load %arg5[%c0_8, %c0_9, %c0_10] : memref<8x1x128xf32, #tpu.memory_space<vmem>>, vector<1x1x128xf32>
    %11 = vector.shape_cast %10 : vector<1x1x128xf32> to vector<1x128xf32>
    %12 = vector.broadcast %11 : vector<1x128xf32> to vector<8x128xf32>
    %13 = arith.addf %9, %12 : vector<8x128xf32>
    %cst_11 = arith.constant 2.000000e-01 : f32
    %14 = vector.broadcast %cst_11 : f32 to vector<8x128xf32>
    %15 = arith.mulf %14, %13 : vector<8x128xf32>
    %16 = arith.maximumf %13, %15 : vector<8x128xf32>
    %cst_12 = arith.constant 1.41421354 : f32
    %17 = vector.broadcast %cst_12 : f32 to vector<8x128xf32>
    %18 = arith.mulf %16, %17 : vector<8x128xf32>
    %19 = arith.truncf %18 : vector<8x128xf32> to vector<8x128xbf16>
    %c1 = arith.constant 1 : index
    %c0_13 = arith.constant 0 : index
    %c0_14 = arith.constant 0 : index
    %20 = vector.load %arg4[%c1, %c0_13, %c0_14] : memref<8x128x128xbf16, #tpu.memory_space<vmem>>, vector<1x128x128xbf16>
    %21 = vector.shape_cast %20 : vector<1x128x128xbf16> to vector<128x128xbf16>
    %cst_15 = arith.constant dense<0.000000e+00> : vector<8x128xf32>
    %22 = tpu.matmul %19, %21, %cst_15 {dimension_numbers = #tpu.dot_dimension_numbers<[1], [0], [0], [1], [0, 0, 1, 1], [], []>} : vector<8x128xbf16>, vector<128x128xbf16>, vector<8x128xf32> -> vector<8x128xf32>
    %c1_16 = arith.constant 1 : index
    %c0_17 = arith.constant 0 : index
    %c0_18 = arith.constant 0 : index
    %23 = vector.load %arg5[%c1_16, %c0_17, %c0_18] : memref<8x1x128xf32, #tpu.memory_space<vmem>>, vector<1x1x128xf32>
    %24 = vector.shape_cast %23 : vector<1x1x128xf32> to vector<1x128xf32>
    %25 = vector.broadcast %24 : vector<1x128xf32> to vector<8x128xf32>
    %26 = arith.addf %22, %25 : vector<8x128xf32>
    %cst_19 = arith.constant 2.000000e-01 : f32
    %27 = vector.broadcast %cst_19 : f32 to vector<8x128xf32>
    %28 = arith.mulf %27, %26 : vector<8x128xf32>
    %29 = arith.maximumf %26, %28 : vector<8x128xf32>
    %cst_20 = arith.constant 1.41421354 : f32
    %30 = vector.broadcast %cst_20 : f32 to vector<8x128xf32>
    %31 = arith.mulf %29, %30 : vector<8x128xf32>
    %32 = arith.truncf %31 : vector<8x128xf32> to vector<8x128xbf16>
    %c2 = arith.constant 2 : index
    %c0_21 = arith.constant 0 : index
    %c0_22 = arith.constant 0 : index
    %33 = vector.load %arg4[%c2, %c0_21, %c0_22] : memref<8x128x128xbf16, #tpu.memory_space<vmem>>, vector<1x128x128xbf16>
    %34 = vector.shape_cast %33 : vector<1x128x128xbf16> to vector<128x128xbf16>
    %cst_23 = arith.constant dense<0.000000e+00> : vector<8x128xf32>
    %35 = tpu.matmul %32, %34, %cst_23 {dimension_numbers = #tpu.dot_dimension_numbers<[1], [0], [0], [1], [0, 0, 1, 1], [], []>} : vector<8x128xbf16>, vector<128x128xbf16>, vector<8x128xf32> -> vector<8x128xf32>
    %c2_24 = arith.constant 2 : index
    %c0_25 = arith.constant 0 : index
    %c0_26 = arith.constant 0 : index
    %36 = vector.load %arg5[%c2_24, %c0_25, %c0_26] : memref<8x1x128xf32, #tpu.memory_space<vmem>>, vector<1x1x128xf32>
    %37 = vector.shape_cast %36 : vector<1x1x128xf32> to vector<1x128xf32>
    %38 = vector.broadcast %37 : vector<1x128xf32> to vector<8x128xf32>
    %39 = arith.addf %35, %38 : vector<8x128xf32>
    %cst_27 = arith.constant 2.000000e-01 : f32
    %40 = vector.broadcast %cst_27 : f32 to vector<8x128xf32>
    %41 = arith.mulf %40, %39 : vector<8x128xf32>
    %42 = arith.maximumf %39, %41 : vector<8x128xf32>
    %cst_28 = arith.constant 1.41421354 : f32
    %43 = vector.broadcast %cst_28 : f32 to vector<8x128xf32>
    %44 = arith.mulf %42, %43 : vector<8x128xf32>
    %45 = arith.truncf %44 : vector<8x128xf32> to vector<8x128xbf16>
    %c3 = arith.constant 3 : index
    %c0_29 = arith.constant 0 : index
    %c0_30 = arith.constant 0 : index
    %46 = vector.load %arg4[%c3, %c0_29, %c0_30] : memref<8x128x128xbf16, #tpu.memory_space<vmem>>, vector<1x128x128xbf16>
    %47 = vector.shape_cast %46 : vector<1x128x128xbf16> to vector<128x128xbf16>
    %cst_31 = arith.constant dense<0.000000e+00> : vector<8x128xf32>
    %48 = tpu.matmul %45, %47, %cst_31 {dimension_numbers = #tpu.dot_dimension_numbers<[1], [0], [0], [1], [0, 0, 1, 1], [], []>} : vector<8x128xbf16>, vector<128x128xbf16>, vector<8x128xf32> -> vector<8x128xf32>
    %c3_32 = arith.constant 3 : index
    %c0_33 = arith.constant 0 : index
    %c0_34 = arith.constant 0 : index
    %49 = vector.load %arg5[%c3_32, %c0_33, %c0_34] : memref<8x1x128xf32, #tpu.memory_space<vmem>>, vector<1x1x128xf32>
    %50 = vector.shape_cast %49 : vector<1x1x128xf32> to vector<1x128xf32>
    %51 = vector.broadcast %50 : vector<1x128xf32> to vector<8x128xf32>
    %52 = arith.addf %48, %51 : vector<8x128xf32>
    %cst_35 = arith.constant 2.000000e-01 : f32
    %53 = vector.broadcast %cst_35 : f32 to vector<8x128xf32>
    %54 = arith.mulf %53, %52 : vector<8x128xf32>
    %55 = arith.maximumf %52, %54 : vector<8x128xf32>
    %cst_36 = arith.constant 1.41421354 : f32
    %56 = vector.broadcast %cst_36 : f32 to vector<8x128xf32>
    %57 = arith.mulf %55, %56 : vector<8x128xf32>
    %c0_37 = arith.constant 0 : index
    %c0_38 = arith.constant 0 : index
    %58 = vector.load %arg3[%c0_37, %c0_38] : memref<1x128xf32, #tpu.memory_space<vmem>>, vector<1x128xf32>
    %59 = vector.broadcast %4 : vector<8x1xf32> to vector<8x128xf32>
    %60 = vector.broadcast %58 : vector<1x128xf32> to vector<8x128xf32>
    %61 = arith.mulf %59, %60 : vector<8x128xf32>
    %62 = arith.addf %57, %61 : vector<8x128xf32>
    %63 = arith.truncf %62 : vector<8x128xf32> to vector<8x128xbf16>
    %c4 = arith.constant 4 : index
    %c0_39 = arith.constant 0 : index
    %c0_40 = arith.constant 0 : index
    %64 = vector.load %arg4[%c4, %c0_39, %c0_40] : memref<8x128x128xbf16, #tpu.memory_space<vmem>>, vector<1x128x128xbf16>
    %65 = vector.shape_cast %64 : vector<1x128x128xbf16> to vector<128x128xbf16>
    %cst_41 = arith.constant dense<0.000000e+00> : vector<8x128xf32>
    %66 = tpu.matmul %63, %65, %cst_41 {dimension_numbers = #tpu.dot_dimension_numbers<[1], [0], [0], [1], [0, 0, 1, 1], [], []>} : vector<8x128xbf16>, vector<128x128xbf16>, vector<8x128xf32> -> vector<8x128xf32>
    %c4_42 = arith.constant 4 : index
    %c0_43 = arith.constant 0 : index
    %c0_44 = arith.constant 0 : index
    %67 = vector.load %arg5[%c4_42, %c0_43, %c0_44] : memref<8x1x128xf32, #tpu.memory_space<vmem>>, vector<1x1x128xf32>
    %68 = vector.shape_cast %67 : vector<1x1x128xf32> to vector<1x128xf32>
    %69 = vector.broadcast %68 : vector<1x128xf32> to vector<8x128xf32>
    %70 = arith.addf %66, %69 : vector<8x128xf32>
    %cst_45 = arith.constant 2.000000e-01 : f32
    %71 = vector.broadcast %cst_45 : f32 to vector<8x128xf32>
    %72 = arith.mulf %71, %70 : vector<8x128xf32>
    %73 = arith.maximumf %70, %72 : vector<8x128xf32>
    %cst_46 = arith.constant 1.41421354 : f32
    %74 = vector.broadcast %cst_46 : f32 to vector<8x128xf32>
    %75 = arith.mulf %73, %74 : vector<8x128xf32>
    %76 = arith.truncf %75 : vector<8x128xf32> to vector<8x128xbf16>
    %c5 = arith.constant 5 : index
    %c0_47 = arith.constant 0 : index
    %c0_48 = arith.constant 0 : index
    %77 = vector.load %arg4[%c5, %c0_47, %c0_48] : memref<8x128x128xbf16, #tpu.memory_space<vmem>>, vector<1x128x128xbf16>
    %78 = vector.shape_cast %77 : vector<1x128x128xbf16> to vector<128x128xbf16>
    %cst_49 = arith.constant dense<0.000000e+00> : vector<8x128xf32>
    %79 = tpu.matmul %76, %78, %cst_49 {dimension_numbers = #tpu.dot_dimension_numbers<[1], [0], [0], [1], [0, 0, 1, 1], [], []>} : vector<8x128xbf16>, vector<128x128xbf16>, vector<8x128xf32> -> vector<8x128xf32>
    %c5_50 = arith.constant 5 : index
    %c0_51 = arith.constant 0 : index
    %c0_52 = arith.constant 0 : index
    %80 = vector.load %arg5[%c5_50, %c0_51, %c0_52] : memref<8x1x128xf32, #tpu.memory_space<vmem>>, vector<1x1x128xf32>
    %81 = vector.shape_cast %80 : vector<1x1x128xf32> to vector<1x128xf32>
    %82 = vector.broadcast %81 : vector<1x128xf32> to vector<8x128xf32>
    %83 = arith.addf %79, %82 : vector<8x128xf32>
    %cst_53 = arith.constant 2.000000e-01 : f32
    %84 = vector.broadcast %cst_53 : f32 to vector<8x128xf32>
    %85 = arith.mulf %84, %83 : vector<8x128xf32>
    %86 = arith.maximumf %83, %85 : vector<8x128xf32>
    %cst_54 = arith.constant 1.41421354 : f32
    %87 = vector.broadcast %cst_54 : f32 to vector<8x128xf32>
    %88 = arith.mulf %86, %87 : vector<8x128xf32>
    %89 = arith.truncf %88 : vector<8x128xf32> to vector<8x128xbf16>
    %c6 = arith.constant 6 : index
    %c0_55 = arith.constant 0 : index
    %c0_56 = arith.constant 0 : index
    %90 = vector.load %arg4[%c6, %c0_55, %c0_56] : memref<8x128x128xbf16, #tpu.memory_space<vmem>>, vector<1x128x128xbf16>
    %91 = vector.shape_cast %90 : vector<1x128x128xbf16> to vector<128x128xbf16>
    %cst_57 = arith.constant dense<0.000000e+00> : vector<8x128xf32>
    %92 = tpu.matmul %89, %91, %cst_57 {dimension_numbers = #tpu.dot_dimension_numbers<[1], [0], [0], [1], [0, 0, 1, 1], [], []>} : vector<8x128xbf16>, vector<128x128xbf16>, vector<8x128xf32> -> vector<8x128xf32>
    %c6_58 = arith.constant 6 : index
    %c0_59 = arith.constant 0 : index
    %c0_60 = arith.constant 0 : index
    %93 = vector.load %arg5[%c6_58, %c0_59, %c0_60] : memref<8x1x128xf32, #tpu.memory_space<vmem>>, vector<1x1x128xf32>
    %94 = vector.shape_cast %93 : vector<1x1x128xf32> to vector<1x128xf32>
    %95 = vector.broadcast %94 : vector<1x128xf32> to vector<8x128xf32>
    %96 = arith.addf %92, %95 : vector<8x128xf32>
    %cst_61 = arith.constant 2.000000e-01 : f32
    %97 = vector.broadcast %cst_61 : f32 to vector<8x128xf32>
    %98 = arith.mulf %97, %96 : vector<8x128xf32>
    %99 = arith.maximumf %96, %98 : vector<8x128xf32>
    %cst_62 = arith.constant 1.41421354 : f32
    %100 = vector.broadcast %cst_62 : f32 to vector<8x128xf32>
    %101 = arith.mulf %99, %100 : vector<8x128xf32>
    %102 = arith.truncf %101 : vector<8x128xf32> to vector<8x128xbf16>
    %c7 = arith.constant 7 : index
    %c0_63 = arith.constant 0 : index
    %c0_64 = arith.constant 0 : index
    %103 = vector.load %arg4[%c7, %c0_63, %c0_64] : memref<8x128x128xbf16, #tpu.memory_space<vmem>>, vector<1x128x128xbf16>
    %104 = vector.shape_cast %103 : vector<1x128x128xbf16> to vector<128x128xbf16>
    %cst_65 = arith.constant dense<0.000000e+00> : vector<8x128xf32>
    %105 = tpu.matmul %102, %104, %cst_65 {dimension_numbers = #tpu.dot_dimension_numbers<[1], [0], [0], [1], [0, 0, 1, 1], [], []>} : vector<8x128xbf16>, vector<128x128xbf16>, vector<8x128xf32> -> vector<8x128xf32>
    %c7_66 = arith.constant 7 : index
    %c0_67 = arith.constant 0 : index
    %c0_68 = arith.constant 0 : index
    %106 = vector.load %arg5[%c7_66, %c0_67, %c0_68] : memref<8x1x128xf32, #tpu.memory_space<vmem>>, vector<1x1x128xf32>
    %107 = vector.shape_cast %106 : vector<1x1x128xf32> to vector<1x128xf32>
    %108 = vector.broadcast %107 : vector<1x128xf32> to vector<8x128xf32>
    %109 = arith.addf %105, %108 : vector<8x128xf32>
    %cst_69 = arith.constant 2.000000e-01 : f32
    %110 = vector.broadcast %cst_69 : f32 to vector<8x128xf32>
    %111 = arith.mulf %110, %109 : vector<8x128xf32>
    %112 = arith.maximumf %109, %111 : vector<8x128xf32>
    %cst_70 = arith.constant 1.41421354 : f32
    %113 = vector.broadcast %cst_70 : f32 to vector<8x128xf32>
    %114 = arith.mulf %112, %113 : vector<8x128xf32>
    %c0_71 = arith.constant 0 : index
    %c0_72 = arith.constant 0 : index
    %115 = vector.load %arg6[%c0_71, %c0_72] : memref<8x128xf32, #tpu.memory_space<vmem>>, vector<8x128xf32>
    tpu.vector_store %arg6[%c0_71, %c0_72], %114 {strides = array<i32>} : memref<8x128xf32, #tpu.memory_space<vmem>>, vector<8x128xf32>,
    return
  }
  func.func @transform_0(%arg0: i32) -> (i32, i32) {
    %c0_i32 = arith.constant 0 : i32
    %c0_i32_0 = arith.constant 0 : i32
    return %arg0, %c0_i32 : i32, i32
  }
  func.func @transform_1(%arg0: i32) -> (i32, i32) {
    %c0_i32 = arith.constant 0 : i32
    %c0_i32_0 = arith.constant 0 : i32
    return %arg0, %c0_i32 : i32, i32
  }
  func.func @transform_2(%arg0: i32) -> (i32, i32) {
    %c0_i32 = arith.constant 0 : i32
    %c0_i32_0 = arith.constant 0 : i32
    %c0_i32_1 = arith.constant 0 : i32
    return %c0_i32, %c0_i32_0 : i32, i32
  }
  func.func @transform_3(%arg0: i32) -> (i32, i32, i32) {
    %c0_i32 = arith.constant 0 : i32
    %c0_i32_0 = arith.constant 0 : i32
    %c0_i32_1 = arith.constant 0 : i32
    %c0_i32_2 = arith.constant 0 : i32
    return %c0_i32, %c0_i32_0, %c0_i32_1 : i32, i32, i32
  }
  func.func @transform_4(%arg0: i32) -> (i32, i32, i32) {
    %c0_i32 = arith.constant 0 : i32
    %c0_i32_0 = arith.constant 0 : i32
    %c0_i32_1 = arith.constant 0 : i32
    %c0_i32_2 = arith.constant 0 : i32
    return %c0_i32, %c0_i32_0, %c0_i32_1 : i32, i32, i32
  }
  func.func @transform_5(%arg0: i32) -> (i32, i32) {
    %c0_i32 = arith.constant 0 : i32
    %c0_i32_0 = arith.constant 0 : i32
    return %arg0, %c0_i32 : i32, i32
  }
}

</mosaic_0001>

<llo_original>
// kernel: tpu_custom_call.1
$region0: #{tpu_custom_call.1}
  #allocation0 [shape = 'u32[]', space=smem, size = 0x4, offset = 0x4, fixed_abs, tag = 'smem constant byte address 0x4 - core index']
  #allocation1 [shape = 'u32[72,128]{1,0:T(1,128)}', space=vmem, size = 0x9000, scoped, tag = 'internal scratch']
  %s0 = inlined_call_operand.vmem [shape: f32[8,128], index: 0, kind: input, shape index: {}]
  %s1 = inlined_call_operand.vmem [shape: f32[8,1], index: 1, kind: input, shape index: {}]
  %s2 = inlined_call_operand.vmem [shape: f32[1,128], index: 2, kind: input, shape index: {}]
  %s3 = inlined_call_operand.hbm [shape: bf16[8,128,128], index: 3, kind: input, shape index: {}]
  %s4 = inlined_call_operand.hbm [shape: f32[8,1,128], index: 4, kind: input, shape index: {}]
  %s5 = inlined_call_operand.hbm [shape: f32[8,128], index: 5, kind: output, shape index: {}]
  %s6 = sld [smem:[#allocation0]]
  $region38: #{tpu_custom_call.1} parent=0
    _
  %s8 = ssub.s32 1, %s6
  %s9 = scalar_select 0, %s8, %s6
  $region1: #{tpu_custom_call.1} parent=0
    #allocation2 [shape = 'u8[262144]{0}', space=vmem, size = 0x40000, scoped, tag = 'input window, operand 3, single buffered']
    #allocation3 [shape = 's32[1]{0}', space=sflag, size = 0x4, scoped, tag = 'scoped memory for tpu_custom_call.1']
    #allocation4 [shape = 's32[1]{0}', space=sflag, size = 0x4, scoped, tag = 'scoped memory for tpu_custom_call.1']
    #allocation5 [shape = 'u8[4096]{0}', space=vmem, size = 0x1000, scoped, tag = 'input window, operand 4, single buffered']
    #allocation6 [shape = 's32[1]{0}', space=sflag, size = 0x4, scoped, tag = 'scoped memory for tpu_custom_call.1']
    #allocation7 [shape = 'u8[4096]{0}', space=vmem, size = 0x1000, scoped, tag = 'output window, operand 0, single buffered']
    %10 = vsyncpa [#allocation3], 0
    %11 = vsyncpa [#allocation6], 0
    %12 = vsyncpa [#allocation4], 0
    // Predicated region
    $region2: #{tpu_custom_call.1} parent=1 // pred_check
      _
    $region3: #{tpu_custom_call.1} parent=1 // pred_check_branch
      %14 = sbr.rel (0) target = $region5
    $region4: #{tpu_custom_call.1} parent=1 // pred_region
      _
    $region5: #{tpu_custom_call.1} parent=1 // pred_fallthru
      _
    // Predicated region
    $region6: #{tpu_custom_call.1} parent=1 // pred_check
      _
    $region7: #{tpu_custom_call.1} parent=1 // pred_check_branch
      %16 = sbr.rel (0) target = $region9
    $region8: #{tpu_custom_call.1} parent=1 // pred_region
      _
    $region9: #{tpu_custom_call.1} parent=1 // pred_fallthru
      _
    // Predicated region
    $region10: #{tpu_custom_call.1} parent=1 // pred_check
      _
    $region11: #{tpu_custom_call.1} parent=1 // pred_check_branch
      %18 = sbr.rel (0) target = $region13
    $region12: #{tpu_custom_call.1} parent=1 // pred_region
      _
    $region13: #{tpu_custom_call.1} parent=1 // pred_fallthru
      _
    // Predicated region
    $region14: #{tpu_custom_call.1} parent=1 // pred_check
      _
    $region15: #{tpu_custom_call.1} parent=1 // pred_check_branch
      %20 = sbr.rel (0) target = $region17
    $region16: #{tpu_custom_call.1} parent=1 // pred_region
      %22 = vsyncadd [#allocation3], 0
      %s23 = sshll.u32 %s3, 4
      %s24 = int_to_ptr.hbm [resolvable:$true] %s23
      %s25 = sshll.u32 [#allocation2], 4
      %s26 = int_to_ptr.vmem [resolvable:$true] %s25
      %31 = dma.hbm_to_vmem [thread:$0]  %s24, 8192, %s26, [#allocation3], 64, 64, 4
    $region17: #{tpu_custom_call.1} parent=1 // pred_fallthru
      _
    // Predicated region
    $region18: #{tpu_custom_call.1} parent=1 // pred_check
      _
    $region19: #{tpu_custom_call.1} parent=1 // pred_check_branch
      %33 = sbr.rel (0) target = $region21
    $region20: #{tpu_custom_call.1} parent=1 // pred_region
      %35 = vsyncadd [#allocation6], 0
      %s36 = sshll.u32 %s4, 4
      %s37 = int_to_ptr.hbm [resolvable:$true] %s36
      %s38 = sshll.u32 [#allocation5], 4
      %s39 = int_to_ptr.vmem [resolvable:$true] %s38
      %44 = dma.hbm_to_vmem [thread:$0]  %s37, 128, %s39, [#allocation6], 16, 16, 1
    $region21: #{tpu_custom_call.1} parent=1 // pred_fallthru
      _
    // Predicated region
    $region22: #{tpu_custom_call.1} parent=1 // pred_check
      _
    $region23: #{tpu_custom_call.1} parent=1 // pred_check_branch
      %46 = sbr.rel (0) target = $region25
    $region24: #{tpu_custom_call.1} parent=1 // pred_region
      %48 = dma.done [#allocation3], 8192
    $region25: #{tpu_custom_call.1} parent=1 // pred_fallthru
      _
    // Predicated region
    $region26: #{tpu_custom_call.1} parent=1 // pred_check
      _
    $region27: #{tpu_custom_call.1} parent=1 // pred_check_branch
      %50 = sbr.rel (0) target = $region29
    $region28: #{tpu_custom_call.1} parent=1 // pred_region
      %52 = dma.done [#allocation6], 128
    $region29: #{tpu_custom_call.1} parent=1 // pred_fallthru
      _
    %v53 = vld [vmem:[%s1] sm:$0xff]
    %v54 = vmul.f32 %v53, 2.0
    %v55 = vsub.f32 %v54, 1.0
    %v56 = vld [vmem:[%s0] sm:$0xff]
    %v57 = vpack.c.bf16 %v56, %v56
    %v58 = vld [vmem:[#allocation2] sm:$0xf]
    %v59 = vld [vmem:[#allocation2 + $0x4] sm:$0xf]
    %v60 = vld [vmem:[#allocation2 + $0x8] sm:$0xf]
    %v61 = vld [vmem:[#allocation2 + $0xc] sm:$0xf]
    %v62 = vld [vmem:[#allocation2 + $0x10] sm:$0xf]
    %v63 = vld [vmem:[#allocation2 + $0x14] sm:$0xf]
    %v64 = vld [vmem:[#allocation2 + $0x18] sm:$0xf]
    %v65 = vld [vmem:[#allocation2 + $0x1c] sm:$0xf]
    %v66 = vld [vmem:[#allocation2 + $0x20] sm:$0xf]
    %v67 = vld [vmem:[#allocation2 + $0x24] sm:$0xf]
    %v68 = vld [vmem:[#allocation2 + $0x28] sm:$0xf]
    %v69 = vld [vmem:[#allocation2 + $0x2c] sm:$0xf]
    %v70 = vld [vmem:[#allocation2 + $0x30] sm:$0xf]
    %v71 = vld [vmem:[#allocation2 + $0x34] sm:$0xf]
    %v72 = vld [vmem:[#allocation2 + $0x38] sm:$0xf]
    %v73 = vld [vmem:[#allocation2 + $0x3c] sm:$0xf]
    %v74 = vld [vmem:[#allocation5] sm:$0x1]
    %v76 = vperm.slane %v74, 0
    %v94 = vunpack.c.l.b16 %v58
    %v95 = vunpack.c.l.b16 %v59
    %v96 = vunpack.c.l.b16 %v60
    %v97 = vunpack.c.l.b16 %v61
    %v98 = vunpack.c.l.b16 %v62
    %v99 = vunpack.c.l.b16 %v63
    %v100 = vunpack.c.l.b16 %v64
    %v101 = vunpack.c.l.b16 %v65
    %v102 = vunpack.c.l.b16 %v66
    %v103 = vunpack.c.l.b16 %v67
    %v104 = vunpack.c.l.b16 %v68
    %v105 = vunpack.c.l.b16 %v69
    %v106 = vunpack.c.l.b16 %v70
    %v107 = vunpack.c.l.b16 %v71
    %v108 = vunpack.c.l.b16 %v72
    %v109 = vunpack.c.l.b16 %v73
    %v110 = vpack.c.b16 %v95, %v94
    %v111 = vpack.c.b16 %v97, %v96
    %v112 = vpack.c.b16 %v99, %v98
    %v113 = vpack.c.b16 %v101, %v100
    %v114 = vpack.c.b16 %v103, %v102
    %v115 = vpack.c.b16 %v105, %v104
    %v116 = vpack.c.b16 %v107, %v106
    %v117 = vpack.c.b16 %v109, %v108
    %126 = vmatpush.bf16.msra.mxu0 %v117
    %127 = vmatpush.bf16.msra.mxu0 %v116
    %128 = vmatpush.bf16.msra.mxu0 %v115
    %129 = vmatpush.bf16.msra.mxu0 %v114
    %130 = vmatpush.bf16.msra.mxu0 %v113
    %131 = vmatpush.bf16.msra.mxu0 %v112
    %132 = vmatpush.bf16.msra.mxu0 %v111
    %133 = vmatpush.bf16.msra.mxu0 %v110
    %134 = vmatmul.bf16.gmra.mxu0 %v57
    %v135 = vpop.f32.mrf.mxu0
    %v136 = vadd.f32 %v76, %v135
    %v137 = vpop.f32.mrf.mxu0
    %138 = vdwg.mxu0
    %v139 = vmul.f32 %v136, 0.2
    %v140 = vmax.f32 %v136, %v139
    %v141 = vmul.f32 %v140, 1.4142135
    %v142 = vpack.c.bf16 %v141, %v141
    %s143 = scalar_lea.vmem [#allocation2], 64
    %v144 = vld [vmem:[%s143] sm:$0xf]
    %v145 = vld [vmem:[%s143 + $0x4] sm:$0xf]
    %v146 = vld [vmem:[%s143 + $0x8] sm:$0xf]
    %v147 = vld [vmem:[%s143 + $0xc] sm:$0xf]
    %v148 = vld [vmem:[%s143 + $0x10] sm:$0xf]
    %v149 = vld [vmem:[%s143 + $0x14] sm:$0xf]
    %v150 = vld [vmem:[%s143 + $0x18] sm:$0xf]
    %v151 = vld [vmem:[%s143 + $0x1c] sm:$0xf]
    %v152 = vld [vmem:[%s143 + $0x20] sm:$0xf]
    %v153 = vld [vmem:[%s143 + $0x24] sm:$0xf]
    %v154 = vld [vmem:[%s143 + $0x28] sm:$0xf]
    %v155 = vld [vmem:[%s143 + $0x2c] sm:$0xf]
    %v156 = vld [vmem:[%s143 + $0x30] sm:$0xf]
    %v157 = vld [vmem:[%s143 + $0x34] sm:$0xf]
    %v158 = vld [vmem:[%s143 + $0x38] sm:$0xf]
    %v159 = vld [vmem:[%s143 + $0x3c] sm:$0xf]
    %s160 = scalar_lea.vmem [#allocation5], 1
    %v161 = vld [vmem:[%s160] sm:$0x1]
    %v163 = vperm.slane %v161, 0
    %v181 = vunpack.c.l.b16 %v144
    %v182 = vunpack.c.l.b16 %v145
    %v183 = vunpack.c.l.b16 %v146
    %v184 = vunpack.c.l.b16 %v147
    %v185 = vunpack.c.l.b16 %v148
    %v186 = vunpack.c.l.b16 %v149
    %v187 = vunpack.c.l.b16 %v150
    %v188 = vunpack.c.l.b16 %v151
    %v189 = vunpack.c.l.b16 %v152
    %v190 = vunpack.c.l.b16 %v153
    %v191 = vunpack.c.l.b16 %v154
    %v192 = vunpack.c.l.b16 %v155
    %v193 = vunpack.c.l.b16 %v156
    %v194 = vunpack.c.l.b16 %v157
    %v195 = vunpack.c.l.b16 %v158
    %v196 = vunpack.c.l.b16 %v159
    %v197 = vpack.c.b16 %v182, %v181
    %v198 = vpack.c.b16 %v184, %v183
    %v199 = vpack.c.b16 %v186, %v185
    %v200 = vpack.c.b16 %v188, %v187
    %v201 = vpack.c.b16 %v190, %v189
    %v202 = vpack.c.b16 %v192, %v191
    %v203 = vpack.c.b16 %v194, %v193
    %v204 = vpack.c.b16 %v196, %v195
    %213 = vmatpush.bf16.msra.mxu0 %v204
    %214 = vmatpush.bf16.msra.mxu0 %v203
    %215 = vmatpush.bf16.msra.mxu0 %v202
    %216 = vmatpush.bf16.msra.mxu0 %v201
    %217 = vmatpush.bf16.msra.mxu0 %v200
    %218 = vmatpush.bf16.msra.mxu0 %v199
    %219 = vmatpush.bf16.msra.mxu0 %v198
    %220 = vmatpush.bf16.msra.mxu0 %v197
    %221 = vmatmul.bf16.gmra.mxu0 %v142
    %v222 = vpop.f32.mrf.mxu0
    %v223 = vadd.f32 %v163, %v222
    %v224 = vpop.f32.mrf.mxu0
    %225 = vdwg.mxu0
    %v226 = vmul.f32 %v223, 0.2
    %v227 = vmax.f32 %v223, %v226
    %v228 = vmul.f32 %v227, 1.4142135
    %v229 = vpack.c.bf16 %v228, %v228
    %s230 = scalar_lea.vmem [#allocation2], 128
    %v231 = vld [vmem:[%s230] sm:$0xf]
    %v232 = vld [vmem:[%s230 + $0x4] sm:$0xf]
    %v233 = vld [vmem:[%s230 + $0x8] sm:$0xf]
    %v234 = vld [vmem:[%s230 + $0xc] sm:$0xf]
    %v235 = vld [vmem:[%s230 + $0x10] sm:$0xf]
    %v236 = vld [vmem:[%s230 + $0x14] sm:$0xf]
    %v237 = vld [vmem:[%s230 + $0x18] sm:$0xf]
    %v238 = vld [vmem:[%s230 + $0x1c] sm:$0xf]
    %v239 = vld [vmem:[%s230 + $0x20] sm:$0xf]
    %v240 = vld [vmem:[%s230 + $0x24] sm:$0xf]
    %v241 = vld [vmem:[%s230 + $0x28] sm:$0xf]
    %v242 = vld [vmem:[%s230 + $0x2c] sm:$0xf]
    %v243 = vld [vmem:[%s230 + $0x30] sm:$0xf]
    %v244 = vld [vmem:[%s230 + $0x34] sm:$0xf]
    %v245 = vld [vmem:[%s230 + $0x38] sm:$0xf]
    %v246 = vld [vmem:[%s230 + $0x3c] sm:$0xf]
    %s247 = scalar_lea.vmem [#allocation5], 2
    %v248 = vld [vmem:[%s247] sm:$0x1]
    %v250 = vperm.slane %v248, 0
    %v268 = vunpack.c.l.b16 %v231
    %v269 = vunpack.c.l.b16 %v232
    %v270 = vunpack.c.l.b16 %v233
    %v271 = vunpack.c.l.b16 %v234
    %v272 = vunpack.c.l.b16 %v235
    %v273 = vunpack.c.l.b16 %v236
    %v274 = vunpack.c.l.b16 %v237
    %v275 = vunpack.c.l.b16 %v238
    %v276 = vunpack.c.l.b16 %v239
    %v277 = vunpack.c.l.b16 %v240
    %v278 = vunpack.c.l.b16 %v241
    %v279 = vunpack.c.l.b16 %v242
    %v280 = vunpack.c.l.b16 %v243
    %v281 = vunpack.c.l.b16 %v244
    %v282 = vunpack.c.l.b16 %v245
    %v283 = vunpack.c.l.b16 %v246
    %v284 = vpack.c.b16 %v269, %v268
    %v285 = vpack.c.b16 %v271, %v270
    %v286 = vpack.c.b16 %v273, %v272
    %v287 = vpack.c.b16 %v275, %v274
    %v288 = vpack.c.b16 %v277, %v276
    %v289 = vpack.c.b16 %v279, %v278
    %v290 = vpack.c.b16 %v281, %v280
    %v291 = vpack.c.b16 %v283, %v282
    %300 = vmatpush.bf16.msra.mxu0 %v291
    %301 = vmatpush.bf16.msra.mxu0 %v290
    %302 = vmatpush.bf16.msra.mxu0 %v289
    %303 = vmatpush.bf16.msra.mxu0 %v288
    %304 = vmatpush.bf16.msra.mxu0 %v287
    %305 = vmatpush.bf16.msra.mxu0 %v286
    %306 = vmatpush.bf16.msra.mxu0 %v285
    %307 = vmatpush.bf16.msra.mxu0 %v284
    %308 = vmatmul.bf16.gmra.mxu0 %v229
    %v309 = vpop.f32.mrf.mxu0
    %v310 = vadd.f32 %v250, %v309
    %v311 = vpop.f32.mrf.mxu0
    %312 = vdwg.mxu0
    %v313 = vmul.f32 %v310, 0.2
    %v314 = vmax.f32 %v310, %v313
    %v315 = vmul.f32 %v314, 1.4142135
    %v316 = vpack.c.bf16 %v315, %v315
    %s317 = scalar_lea.vmem [#allocation2], 192
    %v318 = vld [vmem:[%s317] sm:$0xf]
    %v319 = vld [vmem:[%s317 + $0x4] sm:$0xf]
    %v320 = vld [vmem:[%s317 + $0x8] sm:$0xf]
    %v321 = vld [vmem:[%s317 + $0xc] sm:$0xf]
    %v322 = vld [vmem:[%s317 + $0x10] sm:$0xf]
    %v323 = vld [vmem:[%s317 + $0x14] sm:$0xf]
    %v324 = vld [vmem:[%s317 + $0x18] sm:$0xf]
    %v325 = vld [vmem:[%s317 + $0x1c] sm:$0xf]
    %v326 = vld [vmem:[%s317 + $0x20] sm:$0xf]
    %v327 = vld [vmem:[%s317 + $0x24] sm:$0xf]
    %v328 = vld [vmem:[%s317 + $0x28] sm:$0xf]
    %v329 = vld [vmem:[%s317 + $0x2c] sm:$0xf]
    %v330 = vld [vmem:[%s317 + $0x30] sm:$0xf]
    %v331 = vld [vmem:[%s317 + $0x34] sm:$0xf]
    %v332 = vld [vmem:[%s317 + $0x38] sm:$0xf]
    %v333 = vld [vmem:[%s317 + $0x3c] sm:$0xf]
    %s334 = scalar_lea.vmem [#allocation5], 3
    %v335 = vld [vmem:[%s334] sm:$0x1]
    %v337 = vperm.slane %v335, 0
    %v355 = vunpack.c.l.b16 %v318
    %v356 = vunpack.c.l.b16 %v319
    %v357 = vunpack.c.l.b16 %v320
    %v358 = vunpack.c.l.b16 %v321
    %v359 = vunpack.c.l.b16 %v322
    %v360 = vunpack.c.l.b16 %v323
    %v361 = vunpack.c.l.b16 %v324
    %v362 = vunpack.c.l.b16 %v325
    %v363 = vunpack.c.l.b16 %v326
    %v364 = vunpack.c.l.b16 %v327
    %v365 = vunpack.c.l.b16 %v328
    %v366 = vunpack.c.l.b16 %v329
    %v367 = vunpack.c.l.b16 %v330
    %v368 = vunpack.c.l.b16 %v331
    %v369 = vunpack.c.l.b16 %v332
    %v370 = vunpack.c.l.b16 %v333
    %v371 = vpack.c.b16 %v356, %v355
    %v372 = vpack.c.b16 %v358, %v357
    %v373 = vpack.c.b16 %v360, %v359
    %v374 = vpack.c.b16 %v362, %v361
    %v375 = vpack.c.b16 %v364, %v363
    %v376 = vpack.c.b16 %v366, %v365
    %v377 = vpack.c.b16 %v368, %v367
    %v378 = vpack.c.b16 %v370, %v369
    %387 = vmatpush.bf16.msra.mxu0 %v378
    %388 = vmatpush.bf16.msra.mxu0 %v377
    %389 = vmatpush.bf16.msra.mxu0 %v376
    %390 = vmatpush.bf16.msra.mxu0 %v375
    %391 = vmatpush.bf16.msra.mxu0 %v374
    %392 = vmatpush.bf16.msra.mxu0 %v373
    %393 = vmatpush.bf16.msra.mxu0 %v372
    %394 = vmatpush.bf16.msra.mxu0 %v371
    %395 = vmatmul.bf16.gmra.mxu0 %v316
    %v396 = vpop.f32.mrf.mxu0
    %v397 = vadd.f32 %v337, %v396
    %v398 = vpop.f32.mrf.mxu0
    %399 = vdwg.mxu0
    %v400 = vmul.f32 %v397, 0.2
    %v401 = vmax.f32 %v397, %v400
    %v402 = vmul.f32 %v401, 1.4142135
    %v403 = vld [vmem:[%s2] sm:$0x1]
    %405 = vset.pattern.permute.xlu0 0
    %406 = vperm.xlu0 %405, %v55
    %v407 = vpop.permute.xlu0 %406
    %v410 = vperm.slane %v403, 0
    %v412 = vmul.f32 %v407, %v410
    %v413 = vadd.f32 %v402, %v412
    %v414 = vpack.c.bf16 %v413, %v413
    %s415 = scalar_lea.vmem [#allocation2], 256
    %v416 = vld [vmem:[%s415] sm:$0xf]
    %v417 = vld [vmem:[%s415 + $0x4] sm:$0xf]
    %v418 = vld [vmem:[%s415 + $0x8] sm:$0xf]
    %v419 = vld [vmem:[%s415 + $0xc] sm:$0xf]
    %v420 = vld [vmem:[%s415 + $0x10] sm:$0xf]
    %v421 = vld [vmem:[%s415 + $0x14] sm:$0xf]
    %v422 = vld [vmem:[%s415 + $0x18] sm:$0xf]
    %v423 = vld [vmem:[%s415 + $0x1c] sm:$0xf]
    %v424 = vld [vmem:[%s415 + $0x20] sm:$0xf]
    %v425 = vld [vmem:[%s415 + $0x24] sm:$0xf]
    %v426 = vld [vmem:[%s415 + $0x28] sm:$0xf]
    %v427 = vld [vmem:[%s415 + $0x2c] sm:$0xf]
    %v428 = vld [vmem:[%s415 + $0x30] sm:$0xf]
    %v429 = vld [vmem:[%s415 + $0x34] sm:$0xf]
    %v430 = vld [vmem:[%s415 + $0x38] sm:$0xf]
    %v431 = vld [vmem:[%s415 + $0x3c] sm:$0xf]
    %s432 = scalar_lea.vmem [#allocation5], 4
    %v433 = vld [vmem:[%s432] sm:$0x1]
    %v435 = vperm.slane %v433, 0
    %v453 = vunpack.c.l.b16 %v416
    %v454 = vunpack.c.l.b16 %v417
    %v455 = vunpack.c.l.b16 %v418
    %v456 = vunpack.c.l.b16 %v419
    %v457 = vunpack.c.l.b16 %v420
    %v458 = vunpack.c.l.b16 %v421
    %v459 = vunpack.c.l.b16 %v422
    %v460 = vunpack.c.l.b16 %v423
    %v461 = vunpack.c.l.b16 %v424
    %v462 = vunpack.c.l.b16 %v425
    %v463 = vunpack.c.l.b16 %v426
    %v464 = vunpack.c.l.b16 %v427
    %v465 = vunpack.c.l.b16 %v428
    %v466 = vunpack.c.l.b16 %v429
    %v467 = vunpack.c.l.b16 %v430
    %v468 = vunpack.c.l.b16 %v431
    %v469 = vpack.c.b16 %v454, %v453
    %v470 = vpack.c.b16 %v456, %v455
    %v471 = vpack.c.b16 %v458, %v457
    %v472 = vpack.c.b16 %v460, %v459
    %v473 = vpack.c.b16 %v462, %v461
    %v474 = vpack.c.b16 %v464, %v463
    %v475 = vpack.c.b16 %v466, %v465
    %v476 = vpack.c.b16 %v468, %v467
    %485 = vmatpush.bf16.msra.mxu0 %v476
    %486 = vmatpush.bf16.msra.mxu0 %v475
    %487 = vmatpush.bf16.msra.mxu0 %v474
    %488 = vmatpush.bf16.msra.mxu0 %v473
    %489 = vmatpush.bf16.msra.mxu0 %v472
    %490 = vmatpush.bf16.msra.mxu0 %v471
    %491 = vmatpush.bf16.msra.mxu0 %v470
    %492 = vmatpush.bf16.msra.mxu0 %v469
    %493 = vmatmul.bf16.gmra.mxu0 %v414
    %v494 = vpop.f32.mrf.mxu0
    %v495 = vadd.f32 %v435, %v494
    %v496 = vpop.f32.mrf.mxu0
    %497 = vdwg.mxu0
    %v498 = vmul.f32 %v495, 0.2
    %v499 = vmax.f32 %v495, %v498
    %v500 = vmul.f32 %v499, 1.4142135
    %v501 = vpack.c.bf16 %v500, %v500
    %s502 = scalar_lea.vmem [#allocation2], 320
    %v503 = vld [vmem:[%s502] sm:$0xf]
    %v504 = vld [vmem:[%s502 + $0x4] sm:$0xf]
    %v505 = vld [vmem:[%s502 + $0x8] sm:$0xf]
    %v506 = vld [vmem:[%s502 + $0xc] sm:$0xf]
    %v507 = vld [vmem:[%s502 + $0x10] sm:$0xf]
    %v508 = vld [vmem:[%s502 + $0x14] sm:$0xf]
    %v509 = vld [vmem:[%s502 + $0x18] sm:$0xf]
    %v510 = vld [vmem:[%s502 + $0x1c] sm:$0xf]
    %v511 = vld [vmem:[%s502 + $0x20] sm:$0xf]
    %v512 = vld [vmem:[%s502 + $0x24] sm:$0xf]
    %v513 = vld [vmem:[%s502 + $0x28] sm:$0xf]
    %v514 = vld [vmem:[%s502 + $0x2c] sm:$0xf]
    %v515 = vld [vmem:[%s502 + $0x30] sm:$0xf]
    %v516 = vld [vmem:[%s502 + $0x34] sm:$0xf]
    %v517 = vld [vmem:[%s502 + $0x38] sm:$0xf]
    %v518 = vld [vmem:[%s502 + $0x3c] sm:$0xf]
    %s519 = scalar_lea.vmem [#allocation5], 5
    %v520 = vld [vmem:[%s519] sm:$0x1]
    %v522 = vperm.slane %v520, 0
    %v540 = vunpack.c.l.b16 %v503
    %v541 = vunpack.c.l.b16 %v504
    %v542 = vunpack.c.l.b16 %v505
    %v543 = vunpack.c.l.b16 %v506
    %v544 = vunpack.c.l.b16 %v507
    %v545 = vunpack.c.l.b16 %v508
    %v546 = vunpack.c.l.b16 %v509
    %v547 = vunpack.c.l.b16 %v510
    %v548 = vunpack.c.l.b16 %v511
    %v549 = vunpack.c.l.b16 %v512
    %v550 = vunpack.c.l.b16 %v513
    %v551 = vunpack.c.l.b16 %v514
    %v552 = vunpack.c.l.b16 %v515
    %v553 = vunpack.c.l.b16 %v516
    %v554 = vunpack.c.l.b16 %v517
    %v555 = vunpack.c.l.b16 %v518
    %v556 = vpack.c.b16 %v541, %v540
    %v557 = vpack.c.b16 %v543, %v542
    %v558 = vpack.c.b16 %v545, %v544
    %v559 = vpack.c.b16 %v547, %v546
    %v560 = vpack.c.b16 %v549, %v548
    %v561 = vpack.c.b16 %v551, %v550
    %v562 = vpack.c.b16 %v553, %v552
    %v563 = vpack.c.b16 %v555, %v554
    %572 = vmatpush.bf16.msra.mxu0 %v563
    %573 = vmatpush.bf16.msra.mxu0 %v562
    %574 = vmatpush.bf16.msra.mxu0 %v561
    %575 = vmatpush.bf16.msra.mxu0 %v560
    %576 = vmatpush.bf16.msra.mxu0 %v559
    %577 = vmatpush.bf16.msra.mxu0 %v558
    %578 = vmatpush.bf16.msra.mxu0 %v557
    %579 = vmatpush.bf16.msra.mxu0 %v556
    %580 = vmatmul.bf16.gmra.mxu0 %v501
    %v581 = vpop.f32.mrf.mxu0
    %v582 = vadd.f32 %v522, %v581
    %v583 = vpop.f32.mrf.mxu0
    %584 = vdwg.mxu0
    %v585 = vmul.f32 %v582, 0.2
    %v586 = vmax.f32 %v582, %v585
    %v587 = vmul.f32 %v586, 1.4142135
    %v588 = vpack.c.bf16 %v587, %v587
    %s589 = scalar_lea.vmem [#allocation2], 384
    %v590 = vld [vmem:[%s589] sm:$0xf]
    %v591 = vld [vmem:[%s589 + $0x4] sm:$0xf]
    %v592 = vld [vmem:[%s589 + $0x8] sm:$0xf]
    %v593 = vld [vmem:[%s589 + $0xc] sm:$0xf]
    %v594 = vld [vmem:[%s589 + $0x10] sm:$0xf]
    %v595 = vld [vmem:[%s589 + $0x14] sm:$0xf]
    %v596 = vld [vmem:[%s589 + $0x18] sm:$0xf]
    %v597 = vld [vmem:[%s589 + $0x1c] sm:$0xf]
    %v598 = vld [vmem:[%s589 + $0x20] sm:$0xf]
    %v599 = vld [vmem:[%s589 + $0x24] sm:$0xf]
    %v600 = vld [vmem:[%s589 + $0x28] sm:$0xf]
    %v601 = vld [vmem:[%s589 + $0x2c] sm:$0xf]
    %v602 = vld [vmem:[%s589 + $0x30] sm:$0xf]
    %v603 = vld [vmem:[%s589 + $0x34] sm:$0xf]
    %v604 = vld [vmem:[%s589 + $0x38] sm:$0xf]
    %v605 = vld [vmem:[%s589 + $0x3c] sm:$0xf]
    %s606 = scalar_lea.vmem [#allocation5], 6
    %v607 = vld [vmem:[%s606] sm:$0x1]
    %v609 = vperm.slane %v607, 0
    %v627 = vunpack.c.l.b16 %v590
    %v628 = vunpack.c.l.b16 %v591
    %v629 = vunpack.c.l.b16 %v592
    %v630 = vunpack.c.l.b16 %v593
    %v631 = vunpack.c.l.b16 %v594
    %v632 = vunpack.c.l.b16 %v595
    %v633 = vunpack.c.l.b16 %v596
    %v634 = vunpack.c.l.b16 %v597
    %v635 = vunpack.c.l.b16 %v598
    %v636 = vunpack.c.l.b16 %v599
    %v637 = vunpack.c.l.b16 %v600
    %v638 = vunpack.c.l.b16 %v601
    %v639 = vunpack.c.l.b16 %v602
    %v640 = vunpack.c.l.b16 %v603
    %v641 = vunpack.c.l.b16 %v604
    %v642 = vunpack.c.l.b16 %v605
    %v643 = vpack.c.b16 %v628, %v627
    %v644 = vpack.c.b16 %v630, %v629
    %v645 = vpack.c.b16 %v632, %v631
    %v646 = vpack.c.b16 %v634, %v633
    %v647 = vpack.c.b16 %v636, %v635
    %v648 = vpack.c.b16 %v638, %v637
    %v649 = vpack.c.b16 %v640, %v639
    %v650 = vpack.c.b16 %v642, %v641
    %659 = vmatpush.bf16.msra.mxu0 %v650
    %660 = vmatpush.bf16.msra.mxu0 %v649
    %661 = vmatpush.bf16.msra.mxu0 %v648
    %662 = vmatpush.bf16.msra.mxu0 %v647
    %663 = vmatpush.bf16.msra.mxu0 %v646
    %664 = vmatpush.bf16.msra.mxu0 %v645
    %665 = vmatpush.bf16.msra.mxu0 %v644
    %666 = vmatpush.bf16.msra.mxu0 %v643
    %667 = vmatmul.bf16.gmra.mxu0 %v588
    %v668 = vpop.f32.mrf.mxu0
    %v669 = vadd.f32 %v609, %v668
    %v670 = vpop.f32.mrf.mxu0
    %671 = vdwg.mxu0
    %v672 = vmul.f32 %v669, 0.2
    %v673 = vmax.f32 %v669, %v672
    %v674 = vmul.f32 %v673, 1.4142135
    %v675 = vpack.c.bf16 %v674, %v674
    %s676 = scalar_lea.vmem [#allocation2], 448
    %v677 = vld [vmem:[%s676] sm:$0xf]
    %v678 = vld [vmem:[%s676 + $0x4] sm:$0xf]
    %v679 = vld [vmem:[%s676 + $0x8] sm:$0xf]
    %v680 = vld [vmem:[%s676 + $0xc] sm:$0xf]
    %v681 = vld [vmem:[%s676 + $0x10] sm:$0xf]
    %v682 = vld [vmem:[%s676 + $0x14] sm:$0xf]
    %v683 = vld [vmem:[%s676 + $0x18] sm:$0xf]
    %v684 = vld [vmem:[%s676 + $0x1c] sm:$0xf]
    %v685 = vld [vmem:[%s676 + $0x20] sm:$0xf]
    %v686 = vld [vmem:[%s676 + $0x24] sm:$0xf]
    %v687 = vld [vmem:[%s676 + $0x28] sm:$0xf]
    %v688 = vld [vmem:[%s676 + $0x2c] sm:$0xf]
    %v689 = vld [vmem:[%s676 + $0x30] sm:$0xf]
    %v690 = vld [vmem:[%s676 + $0x34] sm:$0xf]
    %v691 = vld [vmem:[%s676 + $0x38] sm:$0xf]
    %v692 = vld [vmem:[%s676 + $0x3c] sm:$0xf]
    %s693 = scalar_lea.vmem [#allocation5], 7
    %v694 = vld [vmem:[%s693] sm:$0x1]
    %v696 = vperm.slane %v694, 0
    %v714 = vunpack.c.l.b16 %v677
    %v715 = vunpack.c.l.b16 %v678
    %v716 = vunpack.c.l.b16 %v679
    %v717 = vunpack.c.l.b16 %v680
    %v718 = vunpack.c.l.b16 %v681
    %v719 = vunpack.c.l.b16 %v682
    %v720 = vunpack.c.l.b16 %v683
    %v721 = vunpack.c.l.b16 %v684
    %v722 = vunpack.c.l.b16 %v685
    %v723 = vunpack.c.l.b16 %v686
    %v724 = vunpack.c.l.b16 %v687
    %v725 = vunpack.c.l.b16 %v688
    %v726 = vunpack.c.l.b16 %v689
    %v727 = vunpack.c.l.b16 %v690
    %v728 = vunpack.c.l.b16 %v691
    %v729 = vunpack.c.l.b16 %v692
    %v730 = vpack.c.b16 %v715, %v714
    %v731 = vpack.c.b16 %v717, %v716
    %v732 = vpack.c.b16 %v719, %v718
    %v733 = vpack.c.b16 %v721, %v720
    %v734 = vpack.c.b16 %v723, %v722
    %v735 = vpack.c.b16 %v725, %v724
    %v736 = vpack.c.b16 %v727, %v726
    %v737 = vpack.c.b16 %v729, %v728
    %746 = vmatpush.bf16.msra.mxu0 %v737
    %747 = vmatpush.bf16.msra.mxu0 %v736
    %748 = vmatpush.bf16.msra.mxu0 %v735
    %749 = vmatpush.bf16.msra.mxu0 %v734
    %750 = vmatpush.bf16.msra.mxu0 %v733
    %751 = vmatpush.bf16.msra.mxu0 %v732
    %752 = vmatpush.bf16.msra.mxu0 %v731
    %753 = vmatpush.bf16.msra.mxu0 %v730
    %754 = vmatmul.bf16.gmra.mxu0 %v675
    %v755 = vpop.f32.mrf.mxu0
    %v756 = vadd.f32 %v696, %v755
    %v757 = vpop.f32.mrf.mxu0
    %758 = vdwg.mxu0
    %v759 = vmul.f32 %v756, 0.2
    %v760 = vmax.f32 %v756, %v759
    %v761 = vmul.f32 %v760, 1.4142135
    %762 = vst [vmem:[#allocation7] sm:$0xff] %v761
    // Predicated region
    $region30: #{tpu_custom_call.1} parent=1 // pred_check
      _
    $region31: #{tpu_custom_call.1} parent=1 // pred_check_branch
      %764 = sbr.rel (0) target = $region33
    $region32: #{tpu_custom_call.1} parent=1 // pred_region
      %766 = vsyncadd [#allocation4], 0
      %s768 = sshll.u32 [#allocation7], 4
      %s769 = int_to_ptr.vmem [resolvable:$true] %s768
      %s770 = sshll.u32 %s5, 4
      %s771 = int_to_ptr.hbm [resolvable:$true] %s770
      %773 = dma.vmem_to_hbm [thread:$0]  %s769, 128, %s771, [#allocation4]
    $region33: #{tpu_custom_call.1} parent=1 // pred_fallthru
      _
    // Predicated region
    $region34: #{tpu_custom_call.1} parent=1 // pred_check
      _
    $region35: #{tpu_custom_call.1} parent=1 // pred_check_branch
      %775 = sbr.rel (0) target = $region37
    $region36: #{tpu_custom_call.1} parent=1 // pred_region
      %777 = dma.done [#allocation4], 128
    $region37: #{tpu_custom_call.1} parent=1 // pred_fallthru
      _
    %778 = vsyncpa [#allocation3], 1
    %779 = vsyncpa [#allocation6], 1
    %780 = vsyncpa [#allocation4], 1

// kernel: tpu_custom_call.1
$region0: #{tpu_custom_call.1}
  #allocation0 [shape = 'u32[]', space=smem, size = 0x4, offset = 0x4, fixed_abs, tag = 'smem constant byte address 0x4 - core index']
  #allocation1 [shape = 'u32[72,128]{1,0:T(1,128)}', space=vmem, size = 0x9000, scoped, tag = 'internal scratch']
  %s0 = inlined_call_operand.vmem [shape: f32[8,128], index: 0, kind: input, shape index: {}]
  %s1 = inlined_call_operand.vmem [shape: f32[8,1], index: 1, kind: input, shape index: {}]
  %s2 = inlined_call_operand.vmem [shape: f32[1,128], index: 2, kind: input, shape index: {}]
  %s3 = inlined_call_operand.hbm [shape: bf16[8,128,128], index: 3, kind: input, shape index: {}]
  %s4 = inlined_call_operand.hbm [shape: f32[8,1,128], index: 4, kind: input, shape index: {}]
  %s5 = inlined_call_operand.hbm [shape: f32[8,128], index: 5, kind: output, shape index: {}]
  %s6 = sld [smem:[#allocation0]]
  $region38: #{tpu_custom_call.1} parent=0
    _
  %s8 = ssub.s32 1, %s6
  %s9 = scalar_select 0, %s8, %s6
  $region1: #{tpu_custom_call.1} parent=0
    #allocation2 [shape = 'u8[262144]{0}', space=vmem, size = 0x40000, scoped, tag = 'input window, operand 3, single buffered']
    #allocation3 [shape = 's32[1]{0}', space=sflag, size = 0x4, scoped, tag = 'scoped memory for tpu_custom_call.1']
    #allocation4 [shape = 's32[1]{0}', space=sflag, size = 0x4, scoped, tag = 'scoped memory for tpu_custom_call.1']
    #allocation5 [shape = 'u8[4096]{0}', space=vmem, size = 0x1000, scoped, tag = 'input window, operand 4, single buffered']
    #allocation6 [shape = 's32[1]{0}', space=sflag, size = 0x4, scoped, tag = 'scoped memory for tpu_custom_call.1']
    #allocation7 [shape = 'u8[4096]{0}', space=vmem, size = 0x1000, scoped, tag = 'output window, operand 0, single buffered']
    %10 = vsyncpa [#allocation3], 0
    %11 = vsyncpa [#allocation6], 0
    %12 = vsyncpa [#allocation4], 0
    // Predicated region
    $region2: #{tpu_custom_call.1} parent=1 // pred_check
      _
    $region3: #{tpu_custom_call.1} parent=1 // pred_check_branch
      %14 = sbr.rel (0) target = $region5
    $region4: #{tpu_custom_call.1} parent=1 // pred_region
      _
    $region5: #{tpu_custom_call.1} parent=1 // pred_fallthru
      _
    // Predicated region
    $region6: #{tpu_custom_call.1} parent=1 // pred_check
      _
    $region7: #{tpu_custom_call.1} parent=1 // pred_check_branch
      %16 = sbr.rel (0) target = $region9
    $region8: #{tpu_custom_call.1} parent=1 // pred_region
      _
    $region9: #{tpu_custom_call.1} parent=1 // pred_fallthru
      _
    // Predicated region
    $region10: #{tpu_custom_call.1} parent=1 // pred_check
      _
    $region11: #{tpu_custom_call.1} parent=1 // pred_check_branch
      %18 = sbr.rel (0) target = $region13
    $region12: #{tpu_custom_call.1} parent=1 // pred_region
      _
    $region13: #{tpu_custom_call.1} parent=1 // pred_fallthru
      _
    // Predicated region
    $region14: #{tpu_custom_call.1} parent=1 // pred_check
      _
    $region15: #{tpu_custom_call.1} parent=1 // pred_check_branch
      %20 = sbr.rel (0) target = $region17
    $region16: #{tpu_custom_call.1} parent=1 // pred_region
      %22 = vsyncadd [#allocation3], 0
      %s23 = sshll.u32 %s3, 4
      %s24 = int_to_ptr.hbm [resolvable:$true] %s23
      %s25 = sshll.u32 [#allocation2], 4
      %s26 = int_to_ptr.vmem [resolvable:$true] %s25
      %31 = dma.hbm_to_vmem [thread:$0]  %s24, 8192, %s26, [#allocation3], 64, 64, 4
    $region17: #{tpu_custom_call.1} parent=1 // pred_fallthru
      _
    // Predicated region
    $region18: #{tpu_custom_call.1} parent=1 // pred_check
      _
    $region19: #{tpu_custom_call.1} parent=1 // pred_check_branch
      %33 = sbr.rel (0) target = $region21
    $region20: #{tpu_custom_call.1} parent=1 // pred_region
      %35 = vsyncadd [#allocation6], 0
      %s36 = sshll.u32 %s4, 4
      %s37 = int_to_ptr.hbm [resolvable:$true] %s36
      %s38 = sshll.u32 [#allocation5], 4
      %s39 = int_to_ptr.vmem [resolvable:$true] %s38
      %44 = dma.hbm_to_vmem [thread:$0]  %s37, 128, %s39, [#allocation6], 16, 16, 1
    $region21: #{tpu_custom_call.1} parent=1 // pred_fallthru
      _
    // Predicated region
    $region22: #{tpu_custom_call.1} parent=1 // pred_check
      _
    $region23: #{tpu_custom_call.1} parent=1 // pred_check_branch
      %46 = sbr.rel (0) target = $region25
    $region24: #{tpu_custom_call.1} parent=1 // pred_region
      %48 = dma.done [#allocation3], 8192
    $region25: #{tpu_custom_call.1} parent=1 // pred_fallthru
      _
    // Predicated region
    $region26: #{tpu_custom_call.1} parent=1 // pred_check
      _
    $region27: #{tpu_custom_call.1} parent=1 // pred_check_branch
      %50 = sbr.rel (0) target = $region29
    $region28: #{tpu_custom_call.1} parent=1 // pred_region
      %52 = dma.done [#allocation6], 128
    $region29: #{tpu_custom_call.1} parent=1 // pred_fallthru
      _
    %v53 = vld [vmem:[%s1] sm:$0xff]
    %v54 = vmul.f32 %v53, 2.0
    %v55 = vsub.f32 %v54, 1.0
    %v56 = vld [vmem:[%s0] sm:$0xff]
    %v57 = vpack.c.bf16 %v56, %v56
    %v58 = vld [vmem:[#allocation2] sm:$0xf]
    %v59 = vld [vmem:[#allocation2 + $0x4] sm:$0xf]
    %v60 = vld [vmem:[#allocation2 + $0x8] sm:$0xf]
    %v61 = vld [vmem:[#allocation2 + $0xc] sm:$0xf]
    %v62 = vld [vmem:[#allocation2 + $0x10] sm:$0xf]
    %v63 = vld [vmem:[#allocation2 + $0x14] sm:$0xf]
    %v64 = vld [vmem:[#allocation2 + $0x18] sm:$0xf]
    %v65 = vld [vmem:[#allocation2 + $0x1c] sm:$0xf]
    %v66 = vld [vmem:[#allocation2 + $0x20] sm:$0xf]
    %v67 = vld [vmem:[#allocation2 + $0x24] sm:$0xf]
    %v68 = vld [vmem:[#allocation2 + $0x28] sm:$0xf]
    %v69 = vld [vmem:[#allocation2 + $0x2c] sm:$0xf]
    %v70 = vld [vmem:[#allocation2 + $0x30] sm:$0xf]
    %v71 = vld [vmem:[#allocation2 + $0x34] sm:$0xf]
    %v72 = vld [vmem:[#allocation2 + $0x38] sm:$0xf]
    %v73 = vld [vmem:[#allocation2 + $0x3c] sm:$0xf]
    %v74 = vld [vmem:[#allocation5] sm:$0x1]
    %v76 = vperm.slane %v74, 0
    %v94 = vunpack.c.l.b16 %v58
    %v95 = vunpack.c.l.b16 %v59
    %v96 = vunpack.c.l.b16 %v60
    %v97 = vunpack.c.l.b16 %v61
    %v98 = vunpack.c.l.b16 %v62
    %v99 = vunpack.c.l.b16 %v63
    %v100 = vunpack.c.l.b16 %v64
    %v101 = vunpack.c.l.b16 %v65
    %v102 = vunpack.c.l.b16 %v66
    %v103 = vunpack.c.l.b16 %v67
    %v104 = vunpack.c.l.b16 %v68
    %v105 = vunpack.c.l.b16 %v69
    %v106 = vunpack.c.l.b16 %v70
    %v107 = vunpack.c.l.b16 %v71
    %v108 = vunpack.c.l.b16 %v72
    %v109 = vunpack.c.l.b16 %v73
    %v110 = vpack.c.b16 %v95, %v94
    %v111 = vpack.c.b16 %v97, %v96
    %v112 = vpack.c.b16 %v99, %v98
    %v113 = vpack.c.b16 %v101, %v100
    %v114 = vpack.c.b16 %v103, %v102
    %v115 = vpack.c.b16 %v105, %v104
    %v116 = vpack.c.b16 %v107, %v106
    %v117 = vpack.c.b16 %v109, %v108
    %126 = vmatpush.bf16.msra.mxu0 %v117
    %127 = vmatpush.bf16.msra.mxu0 %v116
    %128 = vmatpush.bf16.msra.mxu0 %v115
    %129 = vmatpush.bf16.msra.mxu0 %v114
    %130 = vmatpush.bf16.msra.mxu0 %v113
    %131 = vmatpush.bf16.msra.mxu0 %v112
    %132 = vmatpush.bf16.msra.mxu0 %v111
    %133 = vmatpush.bf16.msra.mxu0 %v110
    %134 = vmatmul.bf16.gmra.mxu0 %v57
    %v135 = vpop.f32.mrf.mxu0
    %v136 = vadd.f32 %v76, %v135
    %v137 = vpop.f32.mrf.mxu0
    %138 = vdwg.mxu0
    %v139 = vmul.f32 %v136, 0.2
    %v140 = vmax.f32 %v136, %v139
    %v141 = vmul.f32 %v140, 1.4142135
    %v142 = vpack.c.bf16 %v141, %v141
    %s143 = scalar_lea.vmem [#allocation2], 64
    %v144 = vld [vmem:[%s143] sm:$0xf]
    %v145 = vld [vmem:[%s143 + $0x4] sm:$0xf]
    %v146 = vld [vmem:[%s143 + $0x8] sm:$0xf]
    %v147 = vld [vmem:[%s143 + $0xc] sm:$0xf]
    %v148 = vld [vmem:[%s143 + $0x10] sm:$0xf]
    %v149 = vld [vmem:[%s143 + $0x14] sm:$0xf]
    %v150 = vld [vmem:[%s143 + $0x18] sm:$0xf]
    %v151 = vld [vmem:[%s143 + $0x1c] sm:$0xf]
    %v152 = vld [vmem:[%s143 + $0x20] sm:$0xf]
    %v153 = vld [vmem:[%s143 + $0x24] sm:$0xf]
    %v154 = vld [vmem:[%s143 + $0x28] sm:$0xf]
    %v155 = vld [vmem:[%s143 + $0x2c] sm:$0xf]
    %v156 = vld [vmem:[%s143 + $0x30] sm:$0xf]
    %v157 = vld [vmem:[%s143 + $0x34] sm:$0xf]
    %v158 = vld [vmem:[%s143 + $0x38] sm:$0xf]
    %v159 = vld [vmem:[%s143 + $0x3c] sm:$0xf]
    %s160 = scalar_lea.vmem [#allocation5], 1
    %v161 = vld [vmem:[%s160] sm:$0x1]
    %v163 = vperm.slane %v161, 0
    %v181 = vunpack.c.l.b16 %v144
    %v182 = vunpack.c.l.b16 %v145
    %v183 = vunpack.c.l.b16 %v146
    %v184 = vunpack.c.l.b16 %v147
    %v185 = vunpack.c.l.b16 %v148
    %v186 = vunpack.c.l.b16 %v149
    %v187 = vunpack.c.l.b16 %v150
    %v188 = vunpack.c.l.b16 %v151
    %v189 = vunpack.c.l.b16 %v152
    %v190 = vunpack.c.l.b16 %v153
    %v191 = vunpack.c.l.b16 %v154
    %v192 = vunpack.c.l.b16 %v155
    %v193 = vunpack.c.l.b16 %v156
    %v194 = vunpack.c.l.b16 %v157
    %v195 = vunpack.c.l.b16 %v158
    %v196 = vunpack.c.l.b16 %v159
    %v197 = vpack.c.b16 %v182, %v181
    %v198 = vpack.c.b16 %v184, %v183
    %v199 = vpack.c.b16 %v186, %v185
    %v200 = vpack.c.b16 %v188, %v187
    %v201 = vpack.c.b16 %v190, %v189
    %v202 = vpack.c.b16 %v192, %v191
    %v203 = vpack.c.b16 %v194, %v193
    %v204 = vpack.c.b16 %v196, %v195
    %213 = vmatpush.bf16.msra.mxu0 %v204
    %214 = vmatpush.bf16.msra.mxu0 %v203
    %215 = vmatpush.bf16.msra.mxu0 %v202
    %216 = vmatpush.bf16.msra.mxu0 %v201
    %217 = vmatpush.bf16.msra.mxu0 %v200
    %218 = vmatpush.bf16.msra.mxu0 %v199
    %219 = vmatpush.bf16.msra.mxu0 %v198
    %220 = vmatpush.bf16.msra.mxu0 %v197
    %221 = vmatmul.bf16.gmra.mxu0 %v142
    %v222 = vpop.f32.mrf.mxu0
    %v223 = vadd.f32 %v163, %v222
    %v224 = vpop.f32.mrf.mxu0
    %225 = vdwg.mxu0
    %v226 = vmul.f32 %v223, 0.2
    %v227 = vmax.f32 %v223, %v226
    %v228 = vmul.f32 %v227, 1.4142135
    %v229 = vpack.c.bf16 %v228, %v228
    %s230 = scalar_lea.vmem [#allocation2], 128
    %v231 = vld [vmem:[%s230] sm:$0xf]
    %v232 = vld [vmem:[%s230 + $0x4] sm:$0xf]
    %v233 = vld [vmem:[%s230 + $0x8] sm:$0xf]
    %v234 = vld [vmem:[%s230 + $0xc] sm:$0xf]
    %v235 = vld [vmem:[%s230 + $0x10] sm:$0xf]
    %v236 = vld [vmem:[%s230 + $0x14] sm:$0xf]
    %v237 = vld [vmem:[%s230 + $0x18] sm:$0xf]
    %v238 = vld [vmem:[%s230 + $0x1c] sm:$0xf]
    %v239 = vld [vmem:[%s230 + $0x20] sm:$0xf]
    %v240 = vld [vmem:[%s230 + $0x24] sm:$0xf]
    %v241 = vld [vmem:[%s230 + $0x28] sm:$0xf]
    %v242 = vld [vmem:[%s230 + $0x2c] sm:$0xf]
    %v243 = vld [vmem:[%s230 + $0x30] sm:$0xf]
    %v244 = vld [vmem:[%s230 + $0x34] sm:$0xf]
    %v245 = vld [vmem:[%s230 + $0x38] sm:$0xf]
    %v246 = vld [vmem:[%s230 + $0x3c] sm:$0xf]
    %s247 = scalar_lea.vmem [#allocation5], 2
    %v248 = vld [vmem:[%s247] sm:$0x1]
    %v250 = vperm.slane %v248, 0
    %v268 = vunpack.c.l.b16 %v231
    %v269 = vunpack.c.l.b16 %v232
    %v270 = vunpack.c.l.b16 %v233
    %v271 = vunpack.c.l.b16 %v234
    %v272 = vunpack.c.l.b16 %v235
    %v273 = vunpack.c.l.b16 %v236
    %v274 = vunpack.c.l.b16 %v237
    %v275 = vunpack.c.l.b16 %v238
    %v276 = vunpack.c.l.b16 %v239
    %v277 = vunpack.c.l.b16 %v240
    %v278 = vunpack.c.l.b16 %v241
    %v279 = vunpack.c.l.b16 %v242
    %v280 = vunpack.c.l.b16 %v243
    %v281 = vunpack.c.l.b16 %v244
    %v282 = vunpack.c.l.b16 %v245
    %v283 = vunpack.c.l.b16 %v246
    %v284 = vpack.c.b16 %v269, %v268
    %v285 = vpack.c.b16 %v271, %v270
    %v286 = vpack.c.b16 %v273, %v272
    %v287 = vpack.c.b16 %v275, %v274
    %v288 = vpack.c.b16 %v277, %v276
    %v289 = vpack.c.b16 %v279, %v278
    %v290 = vpack.c.b16 %v281, %v280
    %v291 = vpack.c.b16 %v283, %v282
    %300 = vmatpush.bf16.msra.mxu0 %v291
    %301 = vmatpush.bf16.msra.mxu0 %v290
    %302 = vmatpush.bf16.msra.mxu0 %v289
    %303 = vmatpush.bf16.msra.mxu0 %v288
    %304 = vmatpush.bf16.msra.mxu0 %v287
    %305 = vmatpush.bf16.msra.mxu0 %v286
    %306 = vmatpush.bf16.msra.mxu0 %v285
    %307 = vmatpush.bf16.msra.mxu0 %v284
    %308 = vmatmul.bf16.gmra.mxu0 %v229
    %v309 = vpop.f32.mrf.mxu0
    %v310 = vadd.f32 %v250, %v309
    %v311 = vpop.f32.mrf.mxu0
    %312 = vdwg.mxu0
    %v313 = vmul.f32 %v310, 0.2
    %v314 = vmax.f32 %v310, %v313
    %v315 = vmul.f32 %v314, 1.4142135
    %v316 = vpack.c.bf16 %v315, %v315
    %s317 = scalar_lea.vmem [#allocation2], 192
    %v318 = vld [vmem:[%s317] sm:$0xf]
    %v319 = vld [vmem:[%s317 + $0x4] sm:$0xf]
    %v320 = vld [vmem:[%s317 + $0x8] sm:$0xf]
    %v321 = vld [vmem:[%s317 + $0xc] sm:$0xf]
    %v322 = vld [vmem:[%s317 + $0x10] sm:$0xf]
    %v323 = vld [vmem:[%s317 + $0x14] sm:$0xf]
    %v324 = vld [vmem:[%s317 + $0x18] sm:$0xf]
    %v325 = vld [vmem:[%s317 + $0x1c] sm:$0xf]
    %v326 = vld [vmem:[%s317 + $0x20] sm:$0xf]
    %v327 = vld [vmem:[%s317 + $0x24] sm:$0xf]
    %v328 = vld [vmem:[%s317 + $0x28] sm:$0xf]
    %v329 = vld [vmem:[%s317 + $0x2c] sm:$0xf]
    %v330 = vld [vmem:[%s317 + $0x30] sm:$0xf]
    %v331 = vld [vmem:[%s317 + $0x34] sm:$0xf]
    %v332 = vld [vmem:[%s317 + $0x38] sm:$0xf]
    %v333 = vld [vmem:[%s317 + $0x3c] sm:$0xf]
    %s334 = scalar_lea.vmem [#allocation5], 3
    %v335 = vld [vmem:[%s334] sm:$0x1]
    %v337 = vperm.slane %v335, 0
    %v355 = vunpack.c.l.b16 %v318
    %v356 = vunpack.c.l.b16 %v319
    %v357 = vunpack.c.l.b16 %v320
    %v358 = vunpack.c.l.b16 %v321
    %v359 = vunpack.c.l.b16 %v322
    %v360 = vunpack.c.l.b16 %v323
    %v361 = vunpack.c.l.b16 %v324
    %v362 = vunpack.c.l.b16 %v325
    %v363 = vunpack.c.l.b16 %v326
    %v364 = vunpack.c.l.b16 %v327
    %v365 = vunpack.c.l.b16 %v328
    %v366 = vunpack.c.l.b16 %v329
    %v367 = vunpack.c.l.b16 %v330
    %v368 = vunpack.c.l.b16 %v331
    %v369 = vunpack.c.l.b16 %v332
    %v370 = vunpack.c.l.b16 %v333
    %v371 = vpack.c.b16 %v356, %v355
    %v372 = vpack.c.b16 %v358, %v357
    %v373 = vpack.c.b16 %v360, %v359
    %v374 = vpack.c.b16 %v362, %v361
    %v375 = vpack.c.b16 %v364, %v363
    %v376 = vpack.c.b16 %v366, %v365
    %v377 = vpack.c.b16 %v368, %v367
    %v378 = vpack.c.b16 %v370, %v369
    %387 = vmatpush.bf16.msra.mxu0 %v378
    %388 = vmatpush.bf16.msra.mxu0 %v377
    %389 = vmatpush.bf16.msra.mxu0 %v376
    %390 = vmatpush.bf16.msra.mxu0 %v375
    %391 = vmatpush.bf16.msra.mxu0 %v374
    %392 = vmatpush.bf16.msra.mxu0 %v373
    %393 = vmatpush.bf16.msra.mxu0 %v372
    %394 = vmatpush.bf16.msra.mxu0 %v371
    %395 = vmatmul.bf16.gmra.mxu0 %v316
    %v396 = vpop.f32.mrf.mxu0
    %v397 = vadd.f32 %v337, %v396
    %v398 = vpop.f32.mrf.mxu0
    %399 = vdwg.mxu0
    %v400 = vmul.f32 %v397, 0.2
    %v401 = vmax.f32 %v397, %v400
    %v402 = vmul.f32 %v401, 1.4142135
    %v403 = vld [vmem:[%s2] sm:$0x1]
    %405 = vset.pattern.permute.xlu0 0
    %406 = vperm.xlu0 %405, %v55
    %v407 = vpop.permute.xlu0 %406
    %v410 = vperm.slane %v403, 0
    %v412 = vmul.f32 %v407, %v410
    %v413 = vadd.f32 %v402, %v412
    %v414 = vpack.c.bf16 %v413, %v413
    %s415 = scalar_lea.vmem [#allocation2], 256
    %v416 = vld [vmem:[%s415] sm:$0xf]
    %v417 = vld [vmem:[%s415 + $0x4] sm:$0xf]
    %v418 = vld [vmem:[%s415 + $0x8] sm:$0xf]
    %v419 = vld [vmem:[%s415 + $0xc] sm:$0xf]
    %v420 = vld [vmem:[%s415 + $0x10] sm:$0xf]
    %v421 = vld [vmem:[%s415 + $0x14] sm:$0xf]
    %v422 = vld [vmem:[%s415 + $0x18] sm:$0xf]
    %v423 = vld [vmem:[%s415 + $0x1c] sm:$0xf]
    %v424 = vld [vmem:[%s415 + $0x20] sm:$0xf]
    %v425 = vld [vmem:[%s415 + $0x24] sm:$0xf]
    %v426 = vld [vmem:[%s415 + $0x28] sm:$0xf]
    %v427 = vld [vmem:[%s415 + $0x2c] sm:$0xf]
    %v428 = vld [vmem:[%s415 + $0x30] sm:$0xf]
    %v429 = vld [vmem:[%s415 + $0x34] sm:$0xf]
    %v430 = vld [vmem:[%s415 + $0x38] sm:$0xf]
    %v431 = vld [vmem:[%s415 + $0x3c] sm:$0xf]
    %s432 = scalar_lea.vmem [#allocation5], 4
    %v433 = vld [vmem:[%s432] sm:$0x1]
    %v435 = vperm.slane %v433, 0
    %v453 = vunpack.c.l.b16 %v416
    %v454 = vunpack.c.l.b16 %v417
    %v455 = vunpack.c.l.b16 %v418
    %v456 = vunpack.c.l.b16 %v419
    %v457 = vunpack.c.l.b16 %v420
    %v458 = vunpack.c.l.b16 %v421
    %v459 = vunpack.c.l.b16 %v422
    %v460 = vunpack.c.l.b16 %v423
    %v461 = vunpack.c.l.b16 %v424
    %v462 = vunpack.c.l.b16 %v425
    %v463 = vunpack.c.l.b16 %v426
    %v464 = vunpack.c.l.b16 %v427
    %v465 = vunpack.c.l.b16 %v428
    %v466 = vunpack.c.l.b16 %v429
    %v467 = vunpack.c.l.b16 %v430
    %v468 = vunpack.c.l.b16 %v431
    %v469 = vpack.c.b16 %v454, %v453
    %v470 = vpack.c.b16 %v456, %v455
    %v471 = vpack.c.b16 %v458, %v457
    %v472 = vpack.c.b16 %v460, %v459
    %v473 = vpack.c.b16 %v462, %v461
    %v474 = vpack.c.b16 %v464, %v463
    %v475 = vpack.c.b16 %v466, %v465
    %v476 = vpack.c.b16 %v468, %v467
    %485 = vmatpush.bf16.msra.mxu0 %v476
    %486 = vmatpush.bf16.msra.mxu0 %v475
    %487 = vmatpush.bf16.msra.mxu0 %v474
    %488 = vmatpush.bf16.msra.mxu0 %v473
    %489 = vmatpush.bf16.msra.mxu0 %v472
    %490 = vmatpush.bf16.msra.mxu0 %v471
    %491 = vmatpush.bf16.msra.mxu0 %v470
    %492 = vmatpush.bf16.msra.mxu0 %v469
    %493 = vmatmul.bf16.gmra.mxu0 %v414
    %v494 = vpop.f32.mrf.mxu0
    %v495 = vadd.f32 %v435, %v494
    %v496 = vpop.f32.mrf.mxu0
    %497 = vdwg.mxu0
    %v498 = vmul.f32 %v495, 0.2
    %v499 = vmax.f32 %v495, %v498
    %v500 = vmul.f32 %v499, 1.4142135
    %v501 = vpack.c.bf16 %v500, %v500
    %s502 = scalar_lea.vmem [#allocation2], 320
    %v503 = vld [vmem:[%s502] sm:$0xf]
    %v504 = vld [vmem:[%s502 + $0x4] sm:$0xf]
    %v505 = vld [vmem:[%s502 + $0x8] sm:$0xf]
    %v506 = vld [vmem:[%s502 + $0xc] sm:$0xf]
    %v507 = vld [vmem:[%s502 + $0x10] sm:$0xf]
    %v508 = vld [vmem:[%s502 + $0x14] sm:$0xf]
    %v509 = vld [vmem:[%s502 + $0x18] sm:$0xf]
    %v510 = vld [vmem:[%s502 + $0x1c] sm:$0xf]
    %v511 = vld [vmem:[%s502 + $0x20] sm:$0xf]
    %v512 = vld [vmem:[%s502 + $0x24] sm:$0xf]
    %v513 = vld [vmem:[%s502 + $0x28] sm:$0xf]
    %v514 = vld [vmem:[%s502 + $0x2c] sm:$0xf]
    %v515 = vld [vmem:[%s502 + $0x30] sm:$0xf]
    %v516 = vld [vmem:[%s502 + $0x34] sm:$0xf]
    %v517 = vld [vmem:[%s502 + $0x38] sm:$0xf]
    %v518 = vld [vmem:[%s502 + $0x3c] sm:$0xf]
    %s519 = scalar_lea.vmem [#allocation5], 5
    %v520 = vld [vmem:[%s519] sm:$0x1]
    %v522 = vperm.slane %v520, 0
    %v540 = vunpack.c.l.b16 %v503
    %v541 = vunpack.c.l.b16 %v504
    %v542 = vunpack.c.l.b16 %v505
    %v543 = vunpack.c.l.b16 %v506
    %v544 = vunpack.c.l.b16 %v507
    %v545 = vunpack.c.l.b16 %v508
    %v546 = vunpack.c.l.b16 %v509
    %v547 = vunpack.c.l.b16 %v510
    %v548 = vunpack.c.l.b16 %v511
    %v549 = vunpack.c.l.b16 %v512
    %v550 = vunpack.c.l.b16 %v513
    %v551 = vunpack.c.l.b16 %v514
    %v552 = vunpack.c.l.b16 %v515
    %v553 = vunpack.c.l.b16 %v516
    %v554 = vunpack.c.l.b16 %v517
    %v555 = vunpack.c.l.b16 %v518
    %v556 = vpack.c.b16 %v541, %v540
    %v557 = vpack.c.b16 %v543, %v542
    %v558 = vpack.c.b16 %v545, %v544
    %v559 = vpack.c.b16 %v547, %v546
    %v560 = vpack.c.b16 %v549, %v548
    %v561 = vpack.c.b16 %v551, %v550
    %v562 = vpack.c.b16 %v553, %v552
    %v563 = vpack.c.b16 %v555, %v554
    %572 = vmatpush.bf16.msra.mxu0 %v563
    %573 = vmatpush.bf16.msra.mxu0 %v562
    %574 = vmatpush.bf16.msra.mxu0 %v561
    %575 = vmatpush.bf16.msra.mxu0 %v560
    %576 = vmatpush.bf16.msra.mxu0 %v559
    %577 = vmatpush.bf16.msra.mxu0 %v558
    %578 = vmatpush.bf16.msra.mxu0 %v557
    %579 = vmatpush.bf16.msra.mxu0 %v556
    %580 = vmatmul.bf16.gmra.mxu0 %v501
    %v581 = vpop.f32.mrf.mxu0
    %v582 = vadd.f32 %v522, %v581
    %v583 = vpop.f32.mrf.mxu0
    %584 = vdwg.mxu0
    %v585 = vmul.f32 %v582, 0.2
    %v586 = vmax.f32 %v582, %v585
    %v587 = vmul.f32 %v586, 1.4142135
    %v588 = vpack.c.bf16 %v587, %v587
    %s589 = scalar_lea.vmem [#allocation2], 384
    %v590 = vld [vmem:[%s589] sm:$0xf]
    %v591 = vld [vmem:[%s589 + $0x4] sm:$0xf]
    %v592 = vld [vmem:[%s589 + $0x8] sm:$0xf]
    %v593 = vld [vmem:[%s589 + $0xc] sm:$0xf]
    %v594 = vld [vmem:[%s589 + $0x10] sm:$0xf]
    %v595 = vld [vmem:[%s589 + $0x14] sm:$0xf]
    %v596 = vld [vmem:[%s589 + $0x18] sm:$0xf]
    %v597 = vld [vmem:[%s589 + $0x1c] sm:$0xf]
    %v598 = vld [vmem:[%s589 + $0x20] sm:$0xf]
    %v599 = vld [vmem:[%s589 + $0x24] sm:$0xf]
    %v600 = vld [vmem:[%s589 + $0x28] sm:$0xf]
    %v601 = vld [vmem:[%s589 + $0x2c] sm:$0xf]
    %v602 = vld [vmem:[%s589 + $0x30] sm:$0xf]
    %v603 = vld [vmem:[%s589 + $0x34] sm:$0xf]
    %v604 = vld [vmem:[%s589 + $0x38] sm:$0xf]
    %v605 = vld [vmem:[%s589 + $0x3c] sm:$0xf]
    %s606 = scalar_lea.vmem [#allocation5], 6
    %v607 = vld [vmem:[%s606] sm:$0x1]
    %v609 = vperm.slane %v607, 0
    %v627 = vunpack.c.l.b16 %v590
    %v628 = vunpack.c.l.b16 %v591
    %v629 = vunpack.c.l.b16 %v592
    %v630 = vunpack.c.l.b16 %v593
    %v631 = vunpack.c.l.b16 %v594
    %v632 = vunpack.c.l.b16 %v595
    %v633 = vunpack.c.l.b16 %v596
    %v634 = vunpack.c.l.b16 %v597
    %v635 = vunpack.c.l.b16 %v598
    %v636 = vunpack.c.l.b16 %v599
    %v637 = vunpack.c.l.b16 %v600
    %v638 = vunpack.c.l.b16 %v601
    %v639 = vunpack.c.l.b16 %v602
    %v640 = vunpack.c.l.b16 %v603
    %v641 = vunpack.c.l.b16 %v604
    %v642 = vunpack.c.l.b16 %v605
    %v643 = vpack.c.b16 %v628, %v627
    %v644 = vpack.c.b16 %v630, %v629
    %v645 = vpack.c.b16 %v632, %v631
    %v646 = vpack.c.b16 %v634, %v633
    %v647 = vpack.c.b16 %v636, %v635
    %v648 = vpack.c.b16 %v638, %v637
    %v649 = vpack.c.b16 %v640, %v639
    %v650 = vpack.c.b16 %v642, %v641
    %659 = vmatpush.bf16.msra.mxu0 %v650
    %660 = vmatpush.bf16.msra.mxu0 %v649
    %661 = vmatpush.bf16.msra.mxu0 %v648
    %662 = vmatpush.bf16.msra.mxu0 %v647
    %663 = vmatpush.bf16.msra.mxu0 %v646
    %664 = vmatpush.bf16.msra.mxu0 %v645
    %665 = vmatpush.bf16.msra.mxu0 %v644
    %666 = vmatpush.bf16.msra.mxu0 %v643
    %667 = vmatmul.bf16.gmra.mxu0 %v588
    %v668 = vpop.f32.mrf.mxu0
    %v669 = vadd.f32 %v609, %v668
    %v670 = vpop.f32.mrf.mxu0
    %671 = vdwg.mxu0
    %v672 = vmul.f32 %v669, 0.2
    %v673 = vmax.f32 %v669, %v672
    %v674 = vmul.f32 %v673, 1.4142135
    %v675 = vpack.c.bf16 %v674, %v674
    %s676 = scalar_lea.vmem [#allocation2], 448
    %v677 = vld [vmem:[%s676] sm:$0xf]
    %v678 = vld [vmem:[%s676 + $0x4] sm:$0xf]
    %v679 = vld [vmem:[%s676 + $0x8] sm:$0xf]
    %v680 = vld [vmem:[%s676 + $0xc] sm:$0xf]
    %v681 = vld [vmem:[%s676 + $0x10] sm:$0xf]
    %v682 = vld [vmem:[%s676 + $0x14] sm:$0xf]
    %v683 = vld [vmem:[%s676 + $0x18] sm:$0xf]
    %v684 = vld [vmem:[%s676 + $0x1c] sm:$0xf]
    %v685 = vld [vmem:[%s676 + $0x20] sm:$0xf]
    %v686 = vld [vmem:[%s676 + $0x24] sm:$0xf]
    %v687 = vld [vmem:[%s676 + $0x28] sm:$0xf]
    %v688 = vld [vmem:[%s676 + $0x2c] sm:$0xf]
    %v689 = vld [vmem:[%s676 + $0x30] sm:$0xf]
    %v690 = vld [vmem:[%s676 + $0x34] sm:$0xf]
    %v691 = vld [vmem:[%s676 + $0x38] sm:$0xf]
    %v692 = vld [vmem:[%s676 + $0x3c] sm:$0xf]
    %s693 = scalar_lea.vmem [#allocation5], 7
    %v694 = vld [vmem:[%s693] sm:$0x1]
    %v696 = vperm.slane %v694, 0
    %v714 = vunpack.c.l.b16 %v677
    %v715 = vunpack.c.l.b16 %v678
    %v716 = vunpack.c.l.b16 %v679
    %v717 = vunpack.c.l.b16 %v680
    %v718 = vunpack.c.l.b16 %v681
    %v719 = vunpack.c.l.b16 %v682
    %v720 = vunpack.c.l.b16 %v683
    %v721 = vunpack.c.l.b16 %v684
    %v722 = vunpack.c.l.b16 %v685
    %v723 = vunpack.c.l.b16 %v686
    %v724 = vunpack.c.l.b16 %v687
    %v725 = vunpack.c.l.b16 %v688
    %v726 = vunpack.c.l.b16 %v689
    %v727 = vunpack.c.l.b16 %v690
    %v728 = vunpack.c.l.b16 %v691
    %v729 = vunpack.c.l.b16 %v692
    %v730 = vpack.c.b16 %v715, %v714
    %v731 = vpack.c.b16 %v717, %v716
    %v732 = vpack.c.b16 %v719, %v718
    %v733 = vpack.c.b16 %v721, %v720
    %v734 = vpack.c.b16 %v723, %v722
    %v735 = vpack.c.b16 %v725, %v724
    %v736 = vpack.c.b16 %v727, %v726
    %v737 = vpack.c.b16 %v729, %v728
    %746 = vmatpush.bf16.msra.mxu0 %v737
    %747 = vmatpush.bf16.msra.mxu0 %v736
    %748 = vmatpush.bf16.msra.mxu0 %v735
    %749 = vmatpush.bf16.msra.mxu0 %v734
    %750 = vmatpush.bf16.msra.mxu0 %v733
    %751 = vmatpush.bf16.msra.mxu0 %v732
    %752 = vmatpush.bf16.msra.mxu0 %v731
    %753 = vmatpush.bf16.msra.mxu0 %v730
    %754 = vmatmul.bf16.gmra.mxu0 %v675
    %v755 = vpop.f32.mrf.mxu0
    %v756 = vadd.f32 %v696, %v755
    %v757 = vpop.f32.mrf.mxu0
    %758 = vdwg.mxu0
    %v759 = vmul.f32 %v756, 0.2
    %v760 = vmax.f32 %v756, %v759
    %v761 = vmul.f32 %v760, 1.4142135
    %762 = vst [vmem:[#allocation7] sm:$0xff] %v761
    // Predicated region
    $region30: #{tpu_custom_call.1} parent=1 // pred_check
      _
    $region31: #{tpu_custom_call.1} parent=1 // pred_check_branch
      %764 = sbr.rel (0) target = $region33
    $region32: #{tpu_custom_call.1} parent=1 // pred_region
      %766 = vsyncadd [#allocation4], 0
      %s768 = sshll.u32 [#allocation7], 4
      %s769 = int_to_ptr.vmem [resolvable:$true] %s768
      %s770 = sshll.u32 %s5, 4
      %s771 = int_to_ptr.hbm [resolvable:$true] %s770
      %773 = dma.vmem_to_hbm [thread:$0]  %s769, 128, %s771, [#allocation4]
    $region33: #{tpu_custom_call.1} parent=1 // pred_fallthru
      _
    // Predicated region
    $region34: #{tpu_custom_call.1} parent=1 // pred_check
      _
    $region35: #{tpu_custom_call.1} parent=1 // pred_check_branch
      %775 = sbr.rel (0) target = $region37
    $region36: #{tpu_custom_call.1} parent=1 // pred_region
      %777 = dma.done [#allocation4], 128
    $region37: #{tpu_custom_call.1} parent=1 // pred_fallthru
      _
    %778 = vsyncpa [#allocation3], 1
    %779 = vsyncpa [#allocation6], 1
    %780 = vsyncpa [#allocation4], 1

</llo_original>
